<compile_context>
chip_gen: v7x
topology: tpu7x:2x2x1
jax: 0.10.0
libtpu: 0.0.40
codegen_flags: <defaults>
</compile_context>

<pallas_src>
import functools
import math

import jax
import jax.numpy as jnp
from jax.experimental import pallas as pl
from jax.experimental.pallas import tpu as pltpu


def _round_up(x, m):
    return (x + m - 1) // m * m


# ---------------------------------------------------------------------------
# Fused kernel: stacked LSTM layers + MLP head, single invocation.
# ---------------------------------------------------------------------------
def _fused_lstm_kernel(num_layers, T, Bp, H, x_ref, *refs):
    """x_ref: (T*Bp, D_in), time-major (rows [t*Bp:(t+1)*Bp] are timestep t).

    refs = [w_ih_0, w_hh_0, b_0, ..., w_ih_{L-1}, w_hh_{L-1}, b_{L-1},
            w1, b1, w2, b2, w3, b3, out_ref]
    """
    lstm_refs = refs[: 3 * num_layers]
    w1_ref, b1_ref, w2_ref, b2_ref, w3_ref, b3_ref = refs[3 * num_layers: 3 * num_layers + 6]
    o_ref = refs[-1]

    seq = x_ref[...]                                            # (T*Bp, D_in)
    h = None
    for layer in range(num_layers):
        w_ih = lstm_refs[3 * layer][...]                        # (D_in, 4H)
        w_hh = lstm_refs[3 * layer + 1][...]                    # (H, 4H)
        bias = lstm_refs[3 * layer + 2][...]                    # (1, 4H)

        # Hoisted input projection (+ bias) for ALL timesteps: one MXU matmul
        # with M = T*Bp instead of T tiny matmuls on the serial critical path.
        xp = jnp.dot(seq, w_ih, preferred_element_type=jnp.float32) + bias  # (T*Bp, 4H)

        h = jnp.zeros((Bp, H), jnp.float32)
        c = jnp.zeros((Bp, H), jnp.float32)
        need_seq = layer + 1 < num_layers
        hs = []
        # TODO(synk): for long sequences switch to lax.fori_loop + a VMEM
        # scratch sequence buffer; at T=8 full unrolling is strictly better.
        for t in range(T):
            # Only the recurrent matmul + gate math stay inside the serial chain.
            gates = xp[t * Bp:(t + 1) * Bp, :] + jnp.dot(
                h, w_hh, preferred_element_type=jnp.float32)    # (Bp, 4H)
            # NOTE: for production shapes pick H as a multiple of 128 so these
            # gate slices are vreg-lane aligned (here 4H == 128, slices are 32-wide).
            i_g = jax.nn.sigmoid(gates[:, 0 * H:1 * H])
            f_g = jax.nn.sigmoid(gates[:, 1 * H:2 * H])
            g_g = jnp.tanh(gates[:, 2 * H:3 * H])
            o_g = jax.nn.sigmoid(gates[:, 3 * H:4 * H])
            c = f_g * c + i_g * g_g
            h = o_g * jnp.tanh(c)
            if need_seq:
                hs.append(h)
        if need_seq:
            # Next layer's input sequence, still VMEM/vreg resident (no HBM trip).
            # Operands are full 8-sublane tiles -> cheap, aligned concatenation.
            seq = jnp.concatenate(hs, axis=0)                   # (T*Bp, H)

    # MLP head on the LAST timestep's hidden state only (out[:, -1] in PyTorch).
    z = jnp.dot(h, w1_ref[...], preferred_element_type=jnp.float32) + b1_ref[...]
    z = jnp.maximum(z, 0.0)
    z = jnp.dot(z, w2_ref[...], preferred_element_type=jnp.float32) + b2_ref[...]
    z = jnp.maximum(z, 0.0)
    z = jnp.dot(z, w3_ref[...], preferred_element_type=jnp.float32) + b3_ref[...]
    o_ref[...] = z.astype(o_ref.dtype)                          # (Bp, 1)


def _forward_impl(params, x):
    B, T, D = x.shape
    H = params["lstm"][0]["w_hh_t"].shape[0]
    num_layers = len(params["lstm"])
    Bp = _round_up(B, 8)  # pad batch to full sublane tiles (aligned slices/stores)

    # Time-major 2-D layout, built once in XLA (outside the kernel).
    x_tb = jnp.swapaxes(x, 0, 1)                                # (T, B, D)
    if Bp != B:
        x_tb = jnp.pad(x_tb, ((0, 0), (0, Bp - B), (0, 0)))
    x2d = x_tb.reshape(T * Bp, D)                               # rows: t*Bp + b

    args = [x2d]
    for lp in params["lstm"]:
        args += [lp["w_ih_t"], lp["w_hh_t"], lp["bias"]]
    f1, f2, f3 = params["fc"]
    args += [f1["w_t"], f1["b"], f2["w_t"], f2["b"], f3["w_t"], f3["b"]]

    kernel = functools.partial(_fused_lstm_kernel, num_layers, T, Bp, H)
    vmem_spec = pl.BlockSpec(memory_space=pltpu.MemorySpace.VMEM)
    y = pl.pallas_call(
        kernel,
        out_shape=jax.ShapeDtypeStruct((Bp, 1), jnp.float32),
        in_specs=[vmem_spec] * len(args),
        out_specs=vmem_spec,
    )(*args)
    return y[:B]


lstm_forward = jax.jit(_forward_impl)


# ---------------------------------------------------------------------------
# Parameter init (deterministic, PyTorch-style uniform).
# ---------------------------------------------------------------------------
def init_params(key, input_size, hidden_size, num_layers):
    params = {"lstm": [], "fc": []}
    k = 1.0 / math.sqrt(hidden_size)

    def uni(key, shape, bound):
        return jax.random.uniform(key, shape, jnp.float32, -bound, bound)

    for layer in range(num_layers):
        d_in = input_size if layer == 0 else hidden_size
        key, k1, k2, k3, k4 = jax.random.split(key, 5)
        w_ih = uni(k1, (4 * hidden_size, d_in), k)       # PyTorch layout
        w_hh = uni(k2, (4 * hidden_size, hidden_size), k)
        b_ih = uni(k3, (4 * hidden_size,), k)
        b_hh = uni(k4, (4 * hidden_size,), k)
        params["lstm"].append(
            dict(w_ih_t=w_ih.T,                          # (d_in, 4H)
                 w_hh_t=w_hh.T,                          # (H, 4H)
                 bias=(b_ih + b_hh)[None, :]))           # (1, 4H)

    fc_dims = [(hidden_size, 64), (64, 32), (32, 1)]
    for (fi, fo) in fc_dims:
        key, k1, k2 = jax.random.split(key, 3)
        bound = 1.0 / math.sqrt(fi)
        w = uni(k1, (fo, fi), bound)                     # PyTorch layout
        b = uni(k2, (fo,), bound)
        params["fc"].append(dict(w_t=w.T, b=b[None, :]))
    return params


# ---------------------------------------------------------------------------
# Pure-JAX reference for verification.
# ---------------------------------------------------------------------------
def lstm_forward_ref(params, x):
    out = x
    H = params["lstm"][0]["w_hh_t"].shape[0]
    for lp in params["lstm"]:
        B = out.shape[0]
        h = jnp.zeros((B, H), jnp.float32)
        c = jnp.zeros((B, H), jnp.float32)

        def step(carry, x_t):
            h, c = carry
            g = x_t @ lp["w_ih_t"] + h @ lp["w_hh_t"] + lp["bias"]
            i = jax.nn.sigmoid(g[:, 0 * H:1 * H])
            f = jax.nn.sigmoid(g[:, 1 * H:2 * H])
            gg = jnp.tanh(g[:, 2 * H:3 * H])
            o = jax.nn.sigmoid(g[:, 3 * H:4 * H])
            c = f * c + i * gg
            h = o * jnp.tanh(c)
            return (h, c), h

        (_, _), hs = jax.lax.scan(step, (h, c), jnp.swapaxes(out, 0, 1))
        out = jnp.swapaxes(hs, 0, 1)
    last = out[:, -1, :]
    f1, f2, f3 = params["fc"]
    z = jnp.maximum(last @ f1["w_t"] + f1["b"], 0.0)
    z = jnp.maximum(z @ f2["w_t"] + f2["b"], 0.0)
    return z @ f3["w_t"] + f3["b"]


if __name__ == "__main__":
    B, T = 2, 8
    input_size, hidden_size, num_layers = 16, 32, 2

    key = jax.random.PRNGKey(0)
    key, pkey, xkey = jax.random.split(key, 3)
    params = init_params(pkey, input_size, hidden_size, num_layers)
    x = jax.random.normal(xkey, (B, T, input_size), jnp.float32)

    y = lstm_forward(params, x)
    jax.block_until_ready(y)

    y_ref = lstm_forward_ref(params, x)
    assert y.shape == (B, 1)
    assert jnp.allclose(y, y_ref, atol=1e-4, rtol=1e-4), "mismatch vs JAX reference"

    print("KERNEL_OK")
</pallas_src>

<mosaic_0001>
module attributes {stable_mosaic.version = 11 : i64} {
  func.func @_fused_lstm_kernel(%arg0: memref<64x16xf32, #tpu.memory_space<vmem>>, %arg1: memref<16x128xf32, #tpu.memory_space<vmem>>, %arg2: memref<32x128xf32, #tpu.memory_space<vmem>>, %arg3: memref<1x128xf32, #tpu.memory_space<vmem>>, %arg4: memref<32x128xf32, #tpu.memory_space<vmem>>, %arg5: memref<32x128xf32, #tpu.memory_space<vmem>>, %arg6: memref<1x128xf32, #tpu.memory_space<vmem>>, %arg7: memref<32x64xf32, #tpu.memory_space<vmem>>, %arg8: memref<1x64xf32, #tpu.memory_space<vmem>>, %arg9: memref<64x32xf32, #tpu.memory_space<vmem>>, %arg10: memref<1x32xf32, #tpu.memory_space<vmem>>, %arg11: memref<32x1xf32, #tpu.memory_space<vmem>>, %arg12: memref<1x1xf32, #tpu.memory_space<vmem>>, %arg13: memref<8x1xf32, #tpu.memory_space<vmem>>) attributes {dimension_semantics = [], scalar_prefetch = 0 : i64, scratch_operands = 0 : i64, tpu.core_type = #tpu.core_type<tc>} {
    %c0 = arith.constant 0 : index
    %c0_0 = arith.constant 0 : index
    %0 = vector.load %arg0[%c0, %c0_0] : memref<64x16xf32, #tpu.memory_space<vmem>>, vector<64x16xf32>
    %c0_1 = arith.constant 0 : index
    %c0_2 = arith.constant 0 : index
    %1 = vector.load %arg1[%c0_1, %c0_2] : memref<16x128xf32, #tpu.memory_space<vmem>>, vector<16x128xf32>
    %c0_3 = arith.constant 0 : index
    %c0_4 = arith.constant 0 : index
    %2 = vector.load %arg2[%c0_3, %c0_4] : memref<32x128xf32, #tpu.memory_space<vmem>>, vector<32x128xf32>
    %c0_5 = arith.constant 0 : index
    %c0_6 = arith.constant 0 : index
    %3 = vector.load %arg3[%c0_5, %c0_6] : memref<1x128xf32, #tpu.memory_space<vmem>>, vector<1x128xf32>
    %cst = arith.constant dense<0.000000e+00> : vector<64x128xf32>
    %4 = tpu.matmul %0, %1, %cst {dimension_numbers = #tpu.dot_dimension_numbers<[1], [0], [0], [1], [0, 0, 1, 1], [], []>} : vector<64x16xf32>, vector<16x128xf32>, vector<64x128xf32> -> vector<64x128xf32>
    %5 = vector.broadcast %3 : vector<1x128xf32> to vector<64x128xf32>
    %6 = arith.addf %4, %5 : vector<64x128xf32>
    %cst_7 = arith.constant 0.000000e+00 : f32
    %7 = vector.broadcast %cst_7 : f32 to vector<8x32xf32>
    %cst_8 = arith.constant 0.000000e+00 : f32
    %8 = vector.broadcast %cst_8 : f32 to vector<8x32xf32>
    %9 = vector.extract_strided_slice %6 {offsets = [0, 0], sizes = [8, 128], strides = [1, 1]} : vector<64x128xf32> to vector<8x128xf32>
    %cst_9 = arith.constant dense<0.000000e+00> : vector<8x128xf32>
    %10 = tpu.matmul %7, %2, %cst_9 {dimension_numbers = #tpu.dot_dimension_numbers<[1], [0], [0], [1], [0, 0, 1, 1], [], []>} : vector<8x32xf32>, vector<32x128xf32>, vector<8x128xf32> -> vector<8x128xf32>
    %11 = arith.addf %9, %10 : vector<8x128xf32>
    %12 = vector.extract_strided_slice %11 {offsets = [0, 0], sizes = [8, 32], strides = [1, 1]} : vector<8x128xf32> to vector<8x32xf32>
    %13 = arith.negf %12 : vector<8x32xf32>
    %14 = math.exp %13 : vector<8x32xf32>
    %cst_10 = arith.constant 1.000000e+00 : f32
    %15 = vector.broadcast %cst_10 : f32 to vector<8x32xf32>
    %16 = arith.addf %15, %14 : vector<8x32xf32>
    %17 = arith.divf %15, %16 : vector<8x32xf32>
    %18 = vector.extract_strided_slice %11 {offsets = [0, 32], sizes = [8, 32], strides = [1, 1]} : vector<8x128xf32> to vector<8x32xf32>
    %19 = arith.negf %18 : vector<8x32xf32>
    %20 = math.exp %19 : vector<8x32xf32>
    %cst_11 = arith.constant 1.000000e+00 : f32
    %21 = vector.broadcast %cst_11 : f32 to vector<8x32xf32>
    %22 = arith.addf %21, %20 : vector<8x32xf32>
    %23 = arith.divf %21, %22 : vector<8x32xf32>
    %24 = vector.extract_strided_slice %11 {offsets = [0, 64], sizes = [8, 32], strides = [1, 1]} : vector<8x128xf32> to vector<8x32xf32>
    %25 = math.tanh %24 : vector<8x32xf32>
    %26 = vector.extract_strided_slice %11 {offsets = [0, 96], sizes = [8, 32], strides = [1, 1]} : vector<8x128xf32> to vector<8x32xf32>
    %27 = arith.negf %26 : vector<8x32xf32>
    %28 = math.exp %27 : vector<8x32xf32>
    %cst_12 = arith.constant 1.000000e+00 : f32
    %29 = vector.broadcast %cst_12 : f32 to vector<8x32xf32>
    %30 = arith.addf %29, %28 : vector<8x32xf32>
    %31 = arith.divf %29, %30 : vector<8x32xf32>
    %32 = arith.mulf %23, %8 : vector<8x32xf32>
    %33 = arith.mulf %17, %25 : vector<8x32xf32>
    %34 = arith.addf %32, %33 : vector<8x32xf32>
    %35 = math.tanh %34 : vector<8x32xf32>
    %36 = arith.mulf %31, %35 : vector<8x32xf32>
    %37 = vector.extract_strided_slice %6 {offsets = [8, 0], sizes = [8, 128], strides = [1, 1]} : vector<64x128xf32> to vector<8x128xf32>
    %cst_13 = arith.constant dense<0.000000e+00> : vector<8x128xf32>
    %38 = tpu.matmul %36, %2, %cst_13 {dimension_numbers = #tpu.dot_dimension_numbers<[1], [0], [0], [1], [0, 0, 1, 1], [], []>} : vector<8x32xf32>, vector<32x128xf32>, vector<8x128xf32> -> vector<8x128xf32>
    %39 = arith.addf %37, %38 : vector<8x128xf32>
    %40 = vector.extract_strided_slice %39 {offsets = [0, 0], sizes = [8, 32], strides = [1, 1]} : vector<8x128xf32> to vector<8x32xf32>
    %41 = arith.negf %40 : vector<8x32xf32>
    %42 = math.exp %41 : vector<8x32xf32>
    %cst_14 = arith.constant 1.000000e+00 : f32
    %43 = vector.broadcast %cst_14 : f32 to vector<8x32xf32>
    %44 = arith.addf %43, %42 : vector<8x32xf32>
    %45 = arith.divf %43, %44 : vector<8x32xf32>
    %46 = vector.extract_strided_slice %39 {offsets = [0, 32], sizes = [8, 32], strides = [1, 1]} : vector<8x128xf32> to vector<8x32xf32>
    %47 = arith.negf %46 : vector<8x32xf32>
    %48 = math.exp %47 : vector<8x32xf32>
    %cst_15 = arith.constant 1.000000e+00 : f32
    %49 = vector.broadcast %cst_15 : f32 to vector<8x32xf32>
    %50 = arith.addf %49, %48 : vector<8x32xf32>
    %51 = arith.divf %49, %50 : vector<8x32xf32>
    %52 = vector.extract_strided_slice %39 {offsets = [0, 64], sizes = [8, 32], strides = [1, 1]} : vector<8x128xf32> to vector<8x32xf32>
    %53 = math.tanh %52 : vector<8x32xf32>
    %54 = vector.extract_strided_slice %39 {offsets = [0, 96], sizes = [8, 32], strides = [1, 1]} : vector<8x128xf32> to vector<8x32xf32>
    %55 = arith.negf %54 : vector<8x32xf32>
    %56 = math.exp %55 : vector<8x32xf32>
    %cst_16 = arith.constant 1.000000e+00 : f32
    %57 = vector.broadcast %cst_16 : f32 to vector<8x32xf32>
    %58 = arith.addf %57, %56 : vector<8x32xf32>
    %59 = arith.divf %57, %58 : vector<8x32xf32>
    %60 = arith.mulf %51, %34 : vector<8x32xf32>
    %61 = arith.mulf %45, %53 : vector<8x32xf32>
    %62 = arith.addf %60, %61 : vector<8x32xf32>
    %63 = math.tanh %62 : vector<8x32xf32>
    %64 = arith.mulf %59, %63 : vector<8x32xf32>
    %65 = vector.extract_strided_slice %6 {offsets = [16, 0], sizes = [8, 128], strides = [1, 1]} : vector<64x128xf32> to vector<8x128xf32>
    %cst_17 = arith.constant dense<0.000000e+00> : vector<8x128xf32>
    %66 = tpu.matmul %64, %2, %cst_17 {dimension_numbers = #tpu.dot_dimension_numbers<[1], [0], [0], [1], [0, 0, 1, 1], [], []>} : vector<8x32xf32>, vector<32x128xf32>, vector<8x128xf32> -> vector<8x128xf32>
    %67 = arith.addf %65, %66 : vector<8x128xf32>
    %68 = vector.extract_strided_slice %67 {offsets = [0, 0], sizes = [8, 32], strides = [1, 1]} : vector<8x128xf32> to vector<8x32xf32>
    %69 = arith.negf %68 : vector<8x32xf32>
    %70 = math.exp %69 : vector<8x32xf32>
    %cst_18 = arith.constant 1.000000e+00 : f32
    %71 = vector.broadcast %cst_18 : f32 to vector<8x32xf32>
    %72 = arith.addf %71, %70 : vector<8x32xf32>
    %73 = arith.divf %71, %72 : vector<8x32xf32>
    %74 = vector.extract_strided_slice %67 {offsets = [0, 32], sizes = [8, 32], strides = [1, 1]} : vector<8x128xf32> to vector<8x32xf32>
    %75 = arith.negf %74 : vector<8x32xf32>
    %76 = math.exp %75 : vector<8x32xf32>
    %cst_19 = arith.constant 1.000000e+00 : f32
    %77 = vector.broadcast %cst_19 : f32 to vector<8x32xf32>
    %78 = arith.addf %77, %76 : vector<8x32xf32>
    %79 = arith.divf %77, %78 : vector<8x32xf32>
    %80 = vector.extract_strided_slice %67 {offsets = [0, 64], sizes = [8, 32], strides = [1, 1]} : vector<8x128xf32> to vector<8x32xf32>
    %81 = math.tanh %80 : vector<8x32xf32>
    %82 = vector.extract_strided_slice %67 {offsets = [0, 96], sizes = [8, 32], strides = [1, 1]} : vector<8x128xf32> to vector<8x32xf32>
    %83 = arith.negf %82 : vector<8x32xf32>
    %84 = math.exp %83 : vector<8x32xf32>
    %cst_20 = arith.constant 1.000000e+00 : f32
    %85 = vector.broadcast %cst_20 : f32 to vector<8x32xf32>
    %86 = arith.addf %85, %84 : vector<8x32xf32>
    %87 = arith.divf %85, %86 : vector<8x32xf32>
    %88 = arith.mulf %79, %62 : vector<8x32xf32>
    %89 = arith.mulf %73, %81 : vector<8x32xf32>
    %90 = arith.addf %88, %89 : vector<8x32xf32>
    %91 = math.tanh %90 : vector<8x32xf32>
    %92 = arith.mulf %87, %91 : vector<8x32xf32>
    %93 = vector.extract_strided_slice %6 {offsets = [24, 0], sizes = [8, 128], strides = [1, 1]} : vector<64x128xf32> to vector<8x128xf32>
    %cst_21 = arith.constant dense<0.000000e+00> : vector<8x128xf32>
    %94 = tpu.matmul %92, %2, %cst_21 {dimension_numbers = #tpu.dot_dimension_numbers<[1], [0], [0], [1], [0, 0, 1, 1], [], []>} : vector<8x32xf32>, vector<32x128xf32>, vector<8x128xf32> -> vector<8x128xf32>
    %95 = arith.addf %93, %94 : vector<8x128xf32>
    %96 = vector.extract_strided_slice %95 {offsets = [0, 0], sizes = [8, 32], strides = [1, 1]} : vector<8x128xf32> to vector<8x32xf32>
    %97 = arith.negf %96 : vector<8x32xf32>
    %98 = math.exp %97 : vector<8x32xf32>
    %cst_22 = arith.constant 1.000000e+00 : f32
    %99 = vector.broadcast %cst_22 : f32 to vector<8x32xf32>
    %100 = arith.addf %99, %98 : vector<8x32xf32>
    %101 = arith.divf %99, %100 : vector<8x32xf32>
    %102 = vector.extract_strided_slice %95 {offsets = [0, 32], sizes = [8, 32], strides = [1, 1]} : vector<8x128xf32> to vector<8x32xf32>
    %103 = arith.negf %102 : vector<8x32xf32>
    %104 = math.exp %103 : vector<8x32xf32>
    %cst_23 = arith.constant 1.000000e+00 : f32
    %105 = vector.broadcast %cst_23 : f32 to vector<8x32xf32>
    %106 = arith.addf %105, %104 : vector<8x32xf32>
    %107 = arith.divf %105, %106 : vector<8x32xf32>
    %108 = vector.extract_strided_slice %95 {offsets = [0, 64], sizes = [8, 32], strides = [1, 1]} : vector<8x128xf32> to vector<8x32xf32>
    %109 = math.tanh %108 : vector<8x32xf32>
    %110 = vector.extract_strided_slice %95 {offsets = [0, 96], sizes = [8, 32], strides = [1, 1]} : vector<8x128xf32> to vector<8x32xf32>
    %111 = arith.negf %110 : vector<8x32xf32>
    %112 = math.exp %111 : vector<8x32xf32>
    %cst_24 = arith.constant 1.000000e+00 : f32
    %113 = vector.broadcast %cst_24 : f32 to vector<8x32xf32>
    %114 = arith.addf %113, %112 : vector<8x32xf32>
    %115 = arith.divf %113, %114 : vector<8x32xf32>
    %116 = arith.mulf %107, %90 : vector<8x32xf32>
    %117 = arith.mulf %101, %109 : vector<8x32xf32>
    %118 = arith.addf %116, %117 : vector<8x32xf32>
    %119 = math.tanh %118 : vector<8x32xf32>
    %120 = arith.mulf %115, %119 : vector<8x32xf32>
    %121 = vector.extract_strided_slice %6 {offsets = [32, 0], sizes = [8, 128], strides = [1, 1]} : vector<64x128xf32> to vector<8x128xf32>
    %cst_25 = arith.constant dense<0.000000e+00> : vector<8x128xf32>
    %122 = tpu.matmul %120, %2, %cst_25 {dimension_numbers = #tpu.dot_dimension_numbers<[1], [0], [0], [1], [0, 0, 1, 1], [], []>} : vector<8x32xf32>, vector<32x128xf32>, vector<8x128xf32> -> vector<8x128xf32>
    %123 = arith.addf %121, %122 : vector<8x128xf32>
    %124 = vector.extract_strided_slice %123 {offsets = [0, 0], sizes = [8, 32], strides = [1, 1]} : vector<8x128xf32> to vector<8x32xf32>
    %125 = arith.negf %124 : vector<8x32xf32>
    %126 = math.exp %125 : vector<8x32xf32>
    %cst_26 = arith.constant 1.000000e+00 : f32
    %127 = vector.broadcast %cst_26 : f32 to vector<8x32xf32>
    %128 = arith.addf %127, %126 : vector<8x32xf32>
    %129 = arith.divf %127, %128 : vector<8x32xf32>
    %130 = vector.extract_strided_slice %123 {offsets = [0, 32], sizes = [8, 32], strides = [1, 1]} : vector<8x128xf32> to vector<8x32xf32>
    %131 = arith.negf %130 : vector<8x32xf32>
    %132 = math.exp %131 : vector<8x32xf32>
    %cst_27 = arith.constant 1.000000e+00 : f32
    %133 = vector.broadcast %cst_27 : f32 to vector<8x32xf32>
    %134 = arith.addf %133, %132 : vector<8x32xf32>
    %135 = arith.divf %133, %134 : vector<8x32xf32>
    %136 = vector.extract_strided_slice %123 {offsets = [0, 64], sizes = [8, 32], strides = [1, 1]} : vector<8x128xf32> to vector<8x32xf32>
    %137 = math.tanh %136 : vector<8x32xf32>
    %138 = vector.extract_strided_slice %123 {offsets = [0, 96], sizes = [8, 32], strides = [1, 1]} : vector<8x128xf32> to vector<8x32xf32>
    %139 = arith.negf %138 : vector<8x32xf32>
    %140 = math.exp %139 : vector<8x32xf32>
    %cst_28 = arith.constant 1.000000e+00 : f32
    %141 = vector.broadcast %cst_28 : f32 to vector<8x32xf32>
    %142 = arith.addf %141, %140 : vector<8x32xf32>
    %143 = arith.divf %141, %142 : vector<8x32xf32>
    %144 = arith.mulf %135, %118 : vector<8x32xf32>
    %145 = arith.mulf %129, %137 : vector<8x32xf32>
    %146 = arith.addf %144, %145 : vector<8x32xf32>
    %147 = math.tanh %146 : vector<8x32xf32>
    %148 = arith.mulf %143, %147 : vector<8x32xf32>
    %149 = vector.extract_strided_slice %6 {offsets = [40, 0], sizes = [8, 128], strides = [1, 1]} : vector<64x128xf32> to vector<8x128xf32>
    %cst_29 = arith.constant dense<0.000000e+00> : vector<8x128xf32>
    %150 = tpu.matmul %148, %2, %cst_29 {dimension_numbers = #tpu.dot_dimension_numbers<[1], [0], [0], [1], [0, 0, 1, 1], [], []>} : vector<8x32xf32>, vector<32x128xf32>, vector<8x128xf32> -> vector<8x128xf32>
    %151 = arith.addf %149, %150 : vector<8x128xf32>
    %152 = vector.extract_strided_slice %151 {offsets = [0, 0], sizes = [8, 32], strides = [1, 1]} : vector<8x128xf32> to vector<8x32xf32>
    %153 = arith.negf %152 : vector<8x32xf32>
    %154 = math.exp %153 : vector<8x32xf32>
    %cst_30 = arith.constant 1.000000e+00 : f32
    %155 = vector.broadcast %cst_30 : f32 to vector<8x32xf32>
    %156 = arith.addf %155, %154 : vector<8x32xf32>
    %157 = arith.divf %155, %156 : vector<8x32xf32>
    %158 = vector.extract_strided_slice %151 {offsets = [0, 32], sizes = [8, 32], strides = [1, 1]} : vector<8x128xf32> to vector<8x32xf32>
    %159 = arith.negf %158 : vector<8x32xf32>
    %160 = math.exp %159 : vector<8x32xf32>
    %cst_31 = arith.constant 1.000000e+00 : f32
    %161 = vector.broadcast %cst_31 : f32 to vector<8x32xf32>
    %162 = arith.addf %161, %160 : vector<8x32xf32>
    %163 = arith.divf %161, %162 : vector<8x32xf32>
    %164 = vector.extract_strided_slice %151 {offsets = [0, 64], sizes = [8, 32], strides = [1, 1]} : vector<8x128xf32> to vector<8x32xf32>
    %165 = math.tanh %164 : vector<8x32xf32>
    %166 = vector.extract_strided_slice %151 {offsets = [0, 96], sizes = [8, 32], strides = [1, 1]} : vector<8x128xf32> to vector<8x32xf32>
    %167 = arith.negf %166 : vector<8x32xf32>
    %168 = math.exp %167 : vector<8x32xf32>
    %cst_32 = arith.constant 1.000000e+00 : f32
    %169 = vector.broadcast %cst_32 : f32 to vector<8x32xf32>
    %170 = arith.addf %169, %168 : vector<8x32xf32>
    %171 = arith.divf %169, %170 : vector<8x32xf32>
    %172 = arith.mulf %163, %146 : vector<8x32xf32>
    %173 = arith.mulf %157, %165 : vector<8x32xf32>
    %174 = arith.addf %172, %173 : vector<8x32xf32>
    %175 = math.tanh %174 : vector<8x32xf32>
    %176 = arith.mulf %171, %175 : vector<8x32xf32>
    %177 = vector.extract_strided_slice %6 {offsets = [48, 0], sizes = [8, 128], strides = [1, 1]} : vector<64x128xf32> to vector<8x128xf32>
    %cst_33 = arith.constant dense<0.000000e+00> : vector<8x128xf32>
    %178 = tpu.matmul %176, %2, %cst_33 {dimension_numbers = #tpu.dot_dimension_numbers<[1], [0], [0], [1], [0, 0, 1, 1], [], []>} : vector<8x32xf32>, vector<32x128xf32>, vector<8x128xf32> -> vector<8x128xf32>
    %179 = arith.addf %177, %178 : vector<8x128xf32>
    %180 = vector.extract_strided_slice %179 {offsets = [0, 0], sizes = [8, 32], strides = [1, 1]} : vector<8x128xf32> to vector<8x32xf32>
    %181 = arith.negf %180 : vector<8x32xf32>
    %182 = math.exp %181 : vector<8x32xf32>
    %cst_34 = arith.constant 1.000000e+00 : f32
    %183 = vector.broadcast %cst_34 : f32 to vector<8x32xf32>
    %184 = arith.addf %183, %182 : vector<8x32xf32>
    %185 = arith.divf %183, %184 : vector<8x32xf32>
    %186 = vector.extract_strided_slice %179 {offsets = [0, 32], sizes = [8, 32], strides = [1, 1]} : vector<8x128xf32> to vector<8x32xf32>
    %187 = arith.negf %186 : vector<8x32xf32>
    %188 = math.exp %187 : vector<8x32xf32>
    %cst_35 = arith.constant 1.000000e+00 : f32
    %189 = vector.broadcast %cst_35 : f32 to vector<8x32xf32>
    %190 = arith.addf %189, %188 : vector<8x32xf32>
    %191 = arith.divf %189, %190 : vector<8x32xf32>
    %192 = vector.extract_strided_slice %179 {offsets = [0, 64], sizes = [8, 32], strides = [1, 1]} : vector<8x128xf32> to vector<8x32xf32>
    %193 = math.tanh %192 : vector<8x32xf32>
    %194 = vector.extract_strided_slice %179 {offsets = [0, 96], sizes = [8, 32], strides = [1, 1]} : vector<8x128xf32> to vector<8x32xf32>
    %195 = arith.negf %194 : vector<8x32xf32>
    %196 = math.exp %195 : vector<8x32xf32>
    %cst_36 = arith.constant 1.000000e+00 : f32
    %197 = vector.broadcast %cst_36 : f32 to vector<8x32xf32>
    %198 = arith.addf %197, %196 : vector<8x32xf32>
    %199 = arith.divf %197, %198 : vector<8x32xf32>
    %200 = arith.mulf %191, %174 : vector<8x32xf32>
    %201 = arith.mulf %185, %193 : vector<8x32xf32>
    %202 = arith.addf %200, %201 : vector<8x32xf32>
    %203 = math.tanh %202 : vector<8x32xf32>
    %204 = arith.mulf %199, %203 : vector<8x32xf32>
    %205 = vector.extract_strided_slice %6 {offsets = [56, 0], sizes = [8, 128], strides = [1, 1]} : vector<64x128xf32> to vector<8x128xf32>
    %cst_37 = arith.constant dense<0.000000e+00> : vector<8x128xf32>
    %206 = tpu.matmul %204, %2, %cst_37 {dimension_numbers = #tpu.dot_dimension_numbers<[1], [0], [0], [1], [0, 0, 1, 1], [], []>} : vector<8x32xf32>, vector<32x128xf32>, vector<8x128xf32> -> vector<8x128xf32>
    %207 = arith.addf %205, %206 : vector<8x128xf32>
    %208 = vector.extract_strided_slice %207 {offsets = [0, 0], sizes = [8, 32], strides = [1, 1]} : vector<8x128xf32> to vector<8x32xf32>
    %209 = arith.negf %208 : vector<8x32xf32>
    %210 = math.exp %209 : vector<8x32xf32>
    %cst_38 = arith.constant 1.000000e+00 : f32
    %211 = vector.broadcast %cst_38 : f32 to vector<8x32xf32>
    %212 = arith.addf %211, %210 : vector<8x32xf32>
    %213 = arith.divf %211, %212 : vector<8x32xf32>
    %214 = vector.extract_strided_slice %207 {offsets = [0, 32], sizes = [8, 32], strides = [1, 1]} : vector<8x128xf32> to vector<8x32xf32>
    %215 = arith.negf %214 : vector<8x32xf32>
    %216 = math.exp %215 : vector<8x32xf32>
    %cst_39 = arith.constant 1.000000e+00 : f32
    %217 = vector.broadcast %cst_39 : f32 to vector<8x32xf32>
    %218 = arith.addf %217, %216 : vector<8x32xf32>
    %219 = arith.divf %217, %218 : vector<8x32xf32>
    %220 = vector.extract_strided_slice %207 {offsets = [0, 64], sizes = [8, 32], strides = [1, 1]} : vector<8x128xf32> to vector<8x32xf32>
    %221 = math.tanh %220 : vector<8x32xf32>
    %222 = vector.extract_strided_slice %207 {offsets = [0, 96], sizes = [8, 32], strides = [1, 1]} : vector<8x128xf32> to vector<8x32xf32>
    %223 = arith.negf %222 : vector<8x32xf32>
    %224 = math.exp %223 : vector<8x32xf32>
    %cst_40 = arith.constant 1.000000e+00 : f32
    %225 = vector.broadcast %cst_40 : f32 to vector<8x32xf32>
    %226 = arith.addf %225, %224 : vector<8x32xf32>
    %227 = arith.divf %225, %226 : vector<8x32xf32>
    %228 = arith.mulf %219, %202 : vector<8x32xf32>
    %229 = arith.mulf %213, %221 : vector<8x32xf32>
    %230 = arith.addf %228, %229 : vector<8x32xf32>
    %231 = math.tanh %230 : vector<8x32xf32>
    %232 = arith.mulf %227, %231 : vector<8x32xf32>
    %233 = tpu.concatenate %36, %64, %92, %120, %148, %176, %204, %232 in 0 : vector<8x32xf32>, vector<8x32xf32>, vector<8x32xf32>, vector<8x32xf32>, vector<8x32xf32>, vector<8x32xf32>, vector<8x32xf32>, vector<8x32xf32> -> vector<64x32xf32>
    %c0_41 = arith.constant 0 : index
    %c0_42 = arith.constant 0 : index
    %234 = vector.load %arg4[%c0_41, %c0_42] : memref<32x128xf32, #tpu.memory_space<vmem>>, vector<32x128xf32>
    %c0_43 = arith.constant 0 : index
    %c0_44 = arith.constant 0 : index
    %235 = vector.load %arg5[%c0_43, %c0_44] : memref<32x128xf32, #tpu.memory_space<vmem>>, vector<32x128xf32>
    %c0_45 = arith.constant 0 : index
    %c0_46 = arith.constant 0 : index
    %236 = vector.load %arg6[%c0_45, %c0_46] : memref<1x128xf32, #tpu.memory_space<vmem>>, vector<1x128xf32>
    %cst_47 = arith.constant dense<0.000000e+00> : vector<64x128xf32>
    %237 = tpu.matmul %233, %234, %cst_47 {dimension_numbers = #tpu.dot_dimension_numbers<[1], [0], [0], [1], [0, 0, 1, 1], [], []>} : vector<64x32xf32>, vector<32x128xf32>, vector<64x128xf32> -> vector<64x128xf32>
    %238 = vector.broadcast %236 : vector<1x128xf32> to vector<64x128xf32>
    %239 = arith.addf %237, %238 : vector<64x128xf32>
    %cst_48 = arith.constant 0.000000e+00 : f32
    %240 = vector.broadcast %cst_48 : f32 to vector<8x32xf32>
    %cst_49 = arith.constant 0.000000e+00 : f32
    %241 = vector.broadcast %cst_49 : f32 to vector<8x32xf32>
    %242 = vector.extract_strided_slice %239 {offsets = [0, 0], sizes = [8, 128], strides = [1, 1]} : vector<64x128xf32> to vector<8x128xf32>
    %cst_50 = arith.constant dense<0.000000e+00> : vector<8x128xf32>
    %243 = tpu.matmul %240, %235, %cst_50 {dimension_numbers = #tpu.dot_dimension_numbers<[1], [0], [0], [1], [0, 0, 1, 1], [], []>} : vector<8x32xf32>, vector<32x128xf32>, vector<8x128xf32> -> vector<8x128xf32>
    %244 = arith.addf %242, %243 : vector<8x128xf32>
    %245 = vector.extract_strided_slice %244 {offsets = [0, 0], sizes = [8, 32], strides = [1, 1]} : vector<8x128xf32> to vector<8x32xf32>
    %246 = arith.negf %245 : vector<8x32xf32>
    %247 = math.exp %246 : vector<8x32xf32>
    %cst_51 = arith.constant 1.000000e+00 : f32
    %248 = vector.broadcast %cst_51 : f32 to vector<8x32xf32>
    %249 = arith.addf %248, %247 : vector<8x32xf32>
    %250 = arith.divf %248, %249 : vector<8x32xf32>
    %251 = vector.extract_strided_slice %244 {offsets = [0, 32], sizes = [8, 32], strides = [1, 1]} : vector<8x128xf32> to vector<8x32xf32>
    %252 = arith.negf %251 : vector<8x32xf32>
    %253 = math.exp %252 : vector<8x32xf32>
    %cst_52 = arith.constant 1.000000e+00 : f32
    %254 = vector.broadcast %cst_52 : f32 to vector<8x32xf32>
    %255 = arith.addf %254, %253 : vector<8x32xf32>
    %256 = arith.divf %254, %255 : vector<8x32xf32>
    %257 = vector.extract_strided_slice %244 {offsets = [0, 64], sizes = [8, 32], strides = [1, 1]} : vector<8x128xf32> to vector<8x32xf32>
    %258 = math.tanh %257 : vector<8x32xf32>
    %259 = vector.extract_strided_slice %244 {offsets = [0, 96], sizes = [8, 32], strides = [1, 1]} : vector<8x128xf32> to vector<8x32xf32>
    %260 = arith.negf %259 : vector<8x32xf32>
    %261 = math.exp %260 : vector<8x32xf32>
    %cst_53 = arith.constant 1.000000e+00 : f32
    %262 = vector.broadcast %cst_53 : f32 to vector<8x32xf32>
    %263 = arith.addf %262, %261 : vector<8x32xf32>
    %264 = arith.divf %262, %263 : vector<8x32xf32>
    %265 = arith.mulf %256, %241 : vector<8x32xf32>
    %266 = arith.mulf %250, %258 : vector<8x32xf32>
    %267 = arith.addf %265, %266 : vector<8x32xf32>
    %268 = math.tanh %267 : vector<8x32xf32>
    %269 = arith.mulf %264, %268 : vector<8x32xf32>
    %270 = vector.extract_strided_slice %239 {offsets = [8, 0], sizes = [8, 128], strides = [1, 1]} : vector<64x128xf32> to vector<8x128xf32>
    %cst_54 = arith.constant dense<0.000000e+00> : vector<8x128xf32>
    %271 = tpu.matmul %269, %235, %cst_54 {dimension_numbers = #tpu.dot_dimension_numbers<[1], [0], [0], [1], [0, 0, 1, 1], [], []>} : vector<8x32xf32>, vector<32x128xf32>, vector<8x128xf32> -> vector<8x128xf32>
    %272 = arith.addf %270, %271 : vector<8x128xf32>
    %273 = vector.extract_strided_slice %272 {offsets = [0, 0], sizes = [8, 32], strides = [1, 1]} : vector<8x128xf32> to vector<8x32xf32>
    %274 = arith.negf %273 : vector<8x32xf32>
    %275 = math.exp %274 : vector<8x32xf32>
    %cst_55 = arith.constant 1.000000e+00 : f32
    %276 = vector.broadcast %cst_55 : f32 to vector<8x32xf32>
    %277 = arith.addf %276, %275 : vector<8x32xf32>
    %278 = arith.divf %276, %277 : vector<8x32xf32>
    %279 = vector.extract_strided_slice %272 {offsets = [0, 32], sizes = [8, 32], strides = [1, 1]} : vector<8x128xf32> to vector<8x32xf32>
    %280 = arith.negf %279 : vector<8x32xf32>
    %281 = math.exp %280 : vector<8x32xf32>
    %cst_56 = arith.constant 1.000000e+00 : f32
    %282 = vector.broadcast %cst_56 : f32 to vector<8x32xf32>
    %283 = arith.addf %282, %281 : vector<8x32xf32>
    %284 = arith.divf %282, %283 : vector<8x32xf32>
    %285 = vector.extract_strided_slice %272 {offsets = [0, 64], sizes = [8, 32], strides = [1, 1]} : vector<8x128xf32> to vector<8x32xf32>
    %286 = math.tanh %285 : vector<8x32xf32>
    %287 = vector.extract_strided_slice %272 {offsets = [0, 96], sizes = [8, 32], strides = [1, 1]} : vector<8x128xf32> to vector<8x32xf32>
    %288 = arith.negf %287 : vector<8x32xf32>
    %289 = math.exp %288 : vector<8x32xf32>
    %cst_57 = arith.constant 1.000000e+00 : f32
    %290 = vector.broadcast %cst_57 : f32 to vector<8x32xf32>
    %291 = arith.addf %290, %289 : vector<8x32xf32>
    %292 = arith.divf %290, %291 : vector<8x32xf32>
    %293 = arith.mulf %284, %267 : vector<8x32xf32>
    %294 = arith.mulf %278, %286 : vector<8x32xf32>
    %295 = arith.addf %293, %294 : vector<8x32xf32>
    %296 = math.tanh %295 : vector<8x32xf32>
    %297 = arith.mulf %292, %296 : vector<8x32xf32>
    %298 = vector.extract_strided_slice %239 {offsets = [16, 0], sizes = [8, 128], strides = [1, 1]} : vector<64x128xf32> to vector<8x128xf32>
    %cst_58 = arith.constant dense<0.000000e+00> : vector<8x128xf32>
    %299 = tpu.matmul %297, %235, %cst_58 {dimension_numbers = #tpu.dot_dimension_numbers<[1], [0], [0], [1], [0, 0, 1, 1], [], []>} : vector<8x32xf32>, vector<32x128xf32>, vector<8x128xf32> -> vector<8x128xf32>
    %300 = arith.addf %298, %299 : vector<8x128xf32>
    %301 = vector.extract_strided_slice %300 {offsets = [0, 0], sizes = [8, 32], strides = [1, 1]} : vector<8x128xf32> to vector<8x32xf32>
    %302 = arith.negf %301 : vector<8x32xf32>
    %303 = math.exp %302 : vector<8x32xf32>
    %cst_59 = arith.constant 1.000000e+00 : f32
    %304 = vector.broadcast %cst_59 : f32 to vector<8x32xf32>
    %305 = arith.addf %304, %303 : vector<8x32xf32>
    %306 = arith.divf %304, %305 : vector<8x32xf32>
    %307 = vector.extract_strided_slice %300 {offsets = [0, 32], sizes = [8, 32], strides = [1, 1]} : vector<8x128xf32> to vector<8x32xf32>
    %308 = arith.negf %307 : vector<8x32xf32>
    %309 = math.exp %308 : vector<8x32xf32>
    %cst_60 = arith.constant 1.000000e+00 : f32
    %310 = vector.broadcast %cst_60 : f32 to vector<8x32xf32>
    %311 = arith.addf %310, %309 : vector<8x32xf32>
    %312 = arith.divf %310, %311 : vector<8x32xf32>
    %313 = vector.extract_strided_slice %300 {offsets = [0, 64], sizes = [8, 32], strides = [1, 1]} : vector<8x128xf32> to vector<8x32xf32>
    %314 = math.tanh %313 : vector<8x32xf32>
    %315 = vector.extract_strided_slice %300 {offsets = [0, 96], sizes = [8, 32], strides = [1, 1]} : vector<8x128xf32> to vector<8x32xf32>
    %316 = arith.negf %315 : vector<8x32xf32>
    %317 = math.exp %316 : vector<8x32xf32>
    %cst_61 = arith.constant 1.000000e+00 : f32
    %318 = vector.broadcast %cst_61 : f32 to vector<8x32xf32>
    %319 = arith.addf %318, %317 : vector<8x32xf32>
    %320 = arith.divf %318, %319 : vector<8x32xf32>
    %321 = arith.mulf %312, %295 : vector<8x32xf32>
    %322 = arith.mulf %306, %314 : vector<8x32xf32>
    %323 = arith.addf %321, %322 : vector<8x32xf32>
    %324 = math.tanh %323 : vector<8x32xf32>
    %325 = arith.mulf %320, %324 : vector<8x32xf32>
    %326 = vector.extract_strided_slice %239 {offsets = [24, 0], sizes = [8, 128], strides = [1, 1]} : vector<64x128xf32> to vector<8x128xf32>
    %cst_62 = arith.constant dense<0.000000e+00> : vector<8x128xf32>
    %327 = tpu.matmul %325, %235, %cst_62 {dimension_numbers = #tpu.dot_dimension_numbers<[1], [0], [0], [1], [0, 0, 1, 1], [], []>} : vector<8x32xf32>, vector<32x128xf32>, vector<8x128xf32> -> vector<8x128xf32>
    %328 = arith.addf %326, %327 : vector<8x128xf32>
    %329 = vector.extract_strided_slice %328 {offsets = [0, 0], sizes = [8, 32], strides = [1, 1]} : vector<8x128xf32> to vector<8x32xf32>
    %330 = arith.negf %329 : vector<8x32xf32>
    %331 = math.exp %330 : vector<8x32xf32>
    %cst_63 = arith.constant 1.000000e+00 : f32
    %332 = vector.broadcast %cst_63 : f32 to vector<8x32xf32>
    %333 = arith.addf %332, %331 : vector<8x32xf32>
    %334 = arith.divf %332, %333 : vector<8x32xf32>
    %335 = vector.extract_strided_slice %328 {offsets = [0, 32], sizes = [8, 32], strides = [1, 1]} : vector<8x128xf32> to vector<8x32xf32>
    %336 = arith.negf %335 : vector<8x32xf32>
    %337 = math.exp %336 : vector<8x32xf32>
    %cst_64 = arith.constant 1.000000e+00 : f32
    %338 = vector.broadcast %cst_64 : f32 to vector<8x32xf32>
    %339 = arith.addf %338, %337 : vector<8x32xf32>
    %340 = arith.divf %338, %339 : vector<8x32xf32>
    %341 = vector.extract_strided_slice %328 {offsets = [0, 64], sizes = [8, 32], strides = [1, 1]} : vector<8x128xf32> to vector<8x32xf32>
    %342 = math.tanh %341 : vector<8x32xf32>
    %343 = vector.extract_strided_slice %328 {offsets = [0, 96], sizes = [8, 32], strides = [1, 1]} : vector<8x128xf32> to vector<8x32xf32>
    %344 = arith.negf %343 : vector<8x32xf32>
    %345 = math.exp %344 : vector<8x32xf32>
    %cst_65 = arith.constant 1.000000e+00 : f32
    %346 = vector.broadcast %cst_65 : f32 to vector<8x32xf32>
    %347 = arith.addf %346, %345 : vector<8x32xf32>
    %348 = arith.divf %346, %347 : vector<8x32xf32>
    %349 = arith.mulf %340, %323 : vector<8x32xf32>
    %350 = arith.mulf %334, %342 : vector<8x32xf32>
    %351 = arith.addf %349, %350 : vector<8x32xf32>
    %352 = math.tanh %351 : vector<8x32xf32>
    %353 = arith.mulf %348, %352 : vector<8x32xf32>
    %354 = vector.extract_strided_slice %239 {offsets = [32, 0], sizes = [8, 128], strides = [1, 1]} : vector<64x128xf32> to vector<8x128xf32>
    %cst_66 = arith.constant dense<0.000000e+00> : vector<8x128xf32>
    %355 = tpu.matmul %353, %235, %cst_66 {dimension_numbers = #tpu.dot_dimension_numbers<[1], [0], [0], [1], [0, 0, 1, 1], [], []>} : vector<8x32xf32>, vector<32x128xf32>, vector<8x128xf32> -> vector<8x128xf32>
    %356 = arith.addf %354, %355 : vector<8x128xf32>
    %357 = vector.extract_strided_slice %356 {offsets = [0, 0], sizes = [8, 32], strides = [1, 1]} : vector<8x128xf32> to vector<8x32xf32>
    %358 = arith.negf %357 : vector<8x32xf32>
    %359 = math.exp %358 : vector<8x32xf32>
    %cst_67 = arith.constant 1.000000e+00 : f32
    %360 = vector.broadcast %cst_67 : f32 to vector<8x32xf32>
    %361 = arith.addf %360, %359 : vector<8x32xf32>
    %362 = arith.divf %360, %361 : vector<8x32xf32>
    %363 = vector.extract_strided_slice %356 {offsets = [0, 32], sizes = [8, 32], strides = [1, 1]} : vector<8x128xf32> to vector<8x32xf32>
    %364 = arith.negf %363 : vector<8x32xf32>
    %365 = math.exp %364 : vector<8x32xf32>
    %cst_68 = arith.constant 1.000000e+00 : f32
    %366 = vector.broadcast %cst_68 : f32 to vector<8x32xf32>
    %367 = arith.addf %366, %365 : vector<8x32xf32>
    %368 = arith.divf %366, %367 : vector<8x32xf32>
    %369 = vector.extract_strided_slice %356 {offsets = [0, 64], sizes = [8, 32], strides = [1, 1]} : vector<8x128xf32> to vector<8x32xf32>
    %370 = math.tanh %369 : vector<8x32xf32>
    %371 = vector.extract_strided_slice %356 {offsets = [0, 96], sizes = [8, 32], strides = [1, 1]} : vector<8x128xf32> to vector<8x32xf32>
    %372 = arith.negf %371 : vector<8x32xf32>
    %373 = math.exp %372 : vector<8x32xf32>
    %cst_69 = arith.constant 1.000000e+00 : f32
    %374 = vector.broadcast %cst_69 : f32 to vector<8x32xf32>
    %375 = arith.addf %374, %373 : vector<8x32xf32>
    %376 = arith.divf %374, %375 : vector<8x32xf32>
    %377 = arith.mulf %368, %351 : vector<8x32xf32>
    %378 = arith.mulf %362, %370 : vector<8x32xf32>
    %379 = arith.addf %377, %378 : vector<8x32xf32>
    %380 = math.tanh %379 : vector<8x32xf32>
    %381 = arith.mulf %376, %380 : vector<8x32xf32>
    %382 = vector.extract_strided_slice %239 {offsets = [40, 0], sizes = [8, 128], strides = [1, 1]} : vector<64x128xf32> to vector<8x128xf32>
    %cst_70 = arith.constant dense<0.000000e+00> : vector<8x128xf32>
    %383 = tpu.matmul %381, %235, %cst_70 {dimension_numbers = #tpu.dot_dimension_numbers<[1], [0], [0], [1], [0, 0, 1, 1], [], []>} : vector<8x32xf32>, vector<32x128xf32>, vector<8x128xf32> -> vector<8x128xf32>
    %384 = arith.addf %382, %383 : vector<8x128xf32>
    %385 = vector.extract_strided_slice %384 {offsets = [0, 0], sizes = [8, 32], strides = [1, 1]} : vector<8x128xf32> to vector<8x32xf32>
    %386 = arith.negf %385 : vector<8x32xf32>
    %387 = math.exp %386 : vector<8x32xf32>
    %cst_71 = arith.constant 1.000000e+00 : f32
    %388 = vector.broadcast %cst_71 : f32 to vector<8x32xf32>
    %389 = arith.addf %388, %387 : vector<8x32xf32>
    %390 = arith.divf %388, %389 : vector<8x32xf32>
    %391 = vector.extract_strided_slice %384 {offsets = [0, 32], sizes = [8, 32], strides = [1, 1]} : vector<8x128xf32> to vector<8x32xf32>
    %392 = arith.negf %391 : vector<8x32xf32>
    %393 = math.exp %392 : vector<8x32xf32>
    %cst_72 = arith.constant 1.000000e+00 : f32
    %394 = vector.broadcast %cst_72 : f32 to vector<8x32xf32>
    %395 = arith.addf %394, %393 : vector<8x32xf32>
    %396 = arith.divf %394, %395 : vector<8x32xf32>
    %397 = vector.extract_strided_slice %384 {offsets = [0, 64], sizes = [8, 32], strides = [1, 1]} : vector<8x128xf32> to vector<8x32xf32>
    %398 = math.tanh %397 : vector<8x32xf32>
    %399 = vector.extract_strided_slice %384 {offsets = [0, 96], sizes = [8, 32], strides = [1, 1]} : vector<8x128xf32> to vector<8x32xf32>
    %400 = arith.negf %399 : vector<8x32xf32>
    %401 = math.exp %400 : vector<8x32xf32>
    %cst_73 = arith.constant 1.000000e+00 : f32
    %402 = vector.broadcast %cst_73 : f32 to vector<8x32xf32>
    %403 = arith.addf %402, %401 : vector<8x32xf32>
    %404 = arith.divf %402, %403 : vector<8x32xf32>
    %405 = arith.mulf %396, %379 : vector<8x32xf32>
    %406 = arith.mulf %390, %398 : vector<8x32xf32>
    %407 = arith.addf %405, %406 : vector<8x32xf32>
    %408 = math.tanh %407 : vector<8x32xf32>
    %409 = arith.mulf %404, %408 : vector<8x32xf32>
    %410 = vector.extract_strided_slice %239 {offsets = [48, 0], sizes = [8, 128], strides = [1, 1]} : vector<64x128xf32> to vector<8x128xf32>
    %cst_74 = arith.constant dense<0.000000e+00> : vector<8x128xf32>
    %411 = tpu.matmul %409, %235, %cst_74 {dimension_numbers = #tpu.dot_dimension_numbers<[1], [0], [0], [1], [0, 0, 1, 1], [], []>} : vector<8x32xf32>, vector<32x128xf32>, vector<8x128xf32> -> vector<8x128xf32>
    %412 = arith.addf %410, %411 : vector<8x128xf32>
    %413 = vector.extract_strided_slice %412 {offsets = [0, 0], sizes = [8, 32], strides = [1, 1]} : vector<8x128xf32> to vector<8x32xf32>
    %414 = arith.negf %413 : vector<8x32xf32>
    %415 = math.exp %414 : vector<8x32xf32>
    %cst_75 = arith.constant 1.000000e+00 : f32
    %416 = vector.broadcast %cst_75 : f32 to vector<8x32xf32>
    %417 = arith.addf %416, %415 : vector<8x32xf32>
    %418 = arith.divf %416, %417 : vector<8x32xf32>
    %419 = vector.extract_strided_slice %412 {offsets = [0, 32], sizes = [8, 32], strides = [1, 1]} : vector<8x128xf32> to vector<8x32xf32>
    %420 = arith.negf %419 : vector<8x32xf32>
    %421 = math.exp %420 : vector<8x32xf32>
    %cst_76 = arith.constant 1.000000e+00 : f32
    %422 = vector.broadcast %cst_76 : f32 to vector<8x32xf32>
    %423 = arith.addf %422, %421 : vector<8x32xf32>
    %424 = arith.divf %422, %423 : vector<8x32xf32>
    %425 = vector.extract_strided_slice %412 {offsets = [0, 64], sizes = [8, 32], strides = [1, 1]} : vector<8x128xf32> to vector<8x32xf32>
    %426 = math.tanh %425 : vector<8x32xf32>
    %427 = vector.extract_strided_slice %412 {offsets = [0, 96], sizes = [8, 32], strides = [1, 1]} : vector<8x128xf32> to vector<8x32xf32>
    %428 = arith.negf %427 : vector<8x32xf32>
    %429 = math.exp %428 : vector<8x32xf32>
    %cst_77 = arith.constant 1.000000e+00 : f32
    %430 = vector.broadcast %cst_77 : f32 to vector<8x32xf32>
    %431 = arith.addf %430, %429 : vector<8x32xf32>
    %432 = arith.divf %430, %431 : vector<8x32xf32>
    %433 = arith.mulf %424, %407 : vector<8x32xf32>
    %434 = arith.mulf %418, %426 : vector<8x32xf32>
    %435 = arith.addf %433, %434 : vector<8x32xf32>
    %436 = math.tanh %435 : vector<8x32xf32>
    %437 = arith.mulf %432, %436 : vector<8x32xf32>
    %438 = vector.extract_strided_slice %239 {offsets = [56, 0], sizes = [8, 128], strides = [1, 1]} : vector<64x128xf32> to vector<8x128xf32>
    %cst_78 = arith.constant dense<0.000000e+00> : vector<8x128xf32>
    %439 = tpu.matmul %437, %235, %cst_78 {dimension_numbers = #tpu.dot_dimension_numbers<[1], [0], [0], [1], [0, 0, 1, 1], [], []>} : vector<8x32xf32>, vector<32x128xf32>, vector<8x128xf32> -> vector<8x128xf32>
    %440 = arith.addf %438, %439 : vector<8x128xf32>
    %441 = vector.extract_strided_slice %440 {offsets = [0, 0], sizes = [8, 32], strides = [1, 1]} : vector<8x128xf32> to vector<8x32xf32>
    %442 = arith.negf %441 : vector<8x32xf32>
    %443 = math.exp %442 : vector<8x32xf32>
    %cst_79 = arith.constant 1.000000e+00 : f32
    %444 = vector.broadcast %cst_79 : f32 to vector<8x32xf32>
    %445 = arith.addf %444, %443 : vector<8x32xf32>
    %446 = arith.divf %444, %445 : vector<8x32xf32>
    %447 = vector.extract_strided_slice %440 {offsets = [0, 32], sizes = [8, 32], strides = [1, 1]} : vector<8x128xf32> to vector<8x32xf32>
    %448 = arith.negf %447 : vector<8x32xf32>
    %449 = math.exp %448 : vector<8x32xf32>
    %cst_80 = arith.constant 1.000000e+00 : f32
    %450 = vector.broadcast %cst_80 : f32 to vector<8x32xf32>
    %451 = arith.addf %450, %449 : vector<8x32xf32>
    %452 = arith.divf %450, %451 : vector<8x32xf32>
    %453 = vector.extract_strided_slice %440 {offsets = [0, 64], sizes = [8, 32], strides = [1, 1]} : vector<8x128xf32> to vector<8x32xf32>
    %454 = math.tanh %453 : vector<8x32xf32>
    %455 = vector.extract_strided_slice %440 {offsets = [0, 96], sizes = [8, 32], strides = [1, 1]} : vector<8x128xf32> to vector<8x32xf32>
    %456 = arith.negf %455 : vector<8x32xf32>
    %457 = math.exp %456 : vector<8x32xf32>
    %cst_81 = arith.constant 1.000000e+00 : f32
    %458 = vector.broadcast %cst_81 : f32 to vector<8x32xf32>
    %459 = arith.addf %458, %457 : vector<8x32xf32>
    %460 = arith.divf %458, %459 : vector<8x32xf32>
    %461 = arith.mulf %452, %435 : vector<8x32xf32>
    %462 = arith.mulf %446, %454 : vector<8x32xf32>
    %463 = arith.addf %461, %462 : vector<8x32xf32>
    %464 = math.tanh %463 : vector<8x32xf32>
    %465 = arith.mulf %460, %464 : vector<8x32xf32>
    %c0_82 = arith.constant 0 : index
    %c0_83 = arith.constant 0 : index
    %466 = vector.load %arg7[%c0_82, %c0_83] : memref<32x64xf32, #tpu.memory_space<vmem>>, vector<32x64xf32>
    %cst_84 = arith.constant dense<0.000000e+00> : vector<8x64xf32>
    %467 = tpu.matmul %465, %466, %cst_84 {dimension_numbers = #tpu.dot_dimension_numbers<[1], [0], [0], [1], [0, 0, 1, 1], [], []>} : vector<8x32xf32>, vector<32x64xf32>, vector<8x64xf32> -> vector<8x64xf32>
    %c0_85 = arith.constant 0 : index
    %c0_86 = arith.constant 0 : index
    %468 = vector.load %arg8[%c0_85, %c0_86] : memref<1x64xf32, #tpu.memory_space<vmem>>, vector<1x64xf32>
    %469 = vector.broadcast %468 : vector<1x64xf32> to vector<8x64xf32>
    %470 = arith.addf %467, %469 : vector<8x64xf32>
    %cst_87 = arith.constant 0.000000e+00 : f32
    %471 = vector.broadcast %cst_87 : f32 to vector<8x64xf32>
    %472 = arith.maximumf %470, %471 : vector<8x64xf32>
    %c0_88 = arith.constant 0 : index
    %c0_89 = arith.constant 0 : index
    %473 = vector.load %arg9[%c0_88, %c0_89] : memref<64x32xf32, #tpu.memory_space<vmem>>, vector<64x32xf32>
    %cst_90 = arith.constant dense<0.000000e+00> : vector<8x32xf32>
    %474 = tpu.matmul %472, %473, %cst_90 {dimension_numbers = #tpu.dot_dimension_numbers<[1], [0], [0], [1], [0, 0, 1, 1], [], []>} : vector<8x64xf32>, vector<64x32xf32>, vector<8x32xf32> -> vector<8x32xf32>
    %c0_91 = arith.constant 0 : index
    %c0_92 = arith.constant 0 : index
    %475 = vector.load %arg10[%c0_91, %c0_92] : memref<1x32xf32, #tpu.memory_space<vmem>>, vector<1x32xf32>
    %476 = vector.broadcast %475 : vector<1x32xf32> to vector<8x32xf32>
    %477 = arith.addf %474, %476 : vector<8x32xf32>
    %cst_93 = arith.constant 0.000000e+00 : f32
    %478 = vector.broadcast %cst_93 : f32 to vector<8x32xf32>
    %479 = arith.maximumf %477, %478 : vector<8x32xf32>
    %c0_94 = arith.constant 0 : index
    %c0_95 = arith.constant 0 : index
    %480 = vector.load %arg11[%c0_94, %c0_95] : memref<32x1xf32, #tpu.memory_space<vmem>>, vector<32x1xf32>
    %cst_96 = arith.constant dense<0.000000e+00> : vector<8x1xf32>
    %481 = tpu.matmul %479, %480, %cst_96 {dimension_numbers = #tpu.dot_dimension_numbers<[1], [0], [0], [1], [0, 0, 1, 1], [], []>} : vector<8x32xf32>, vector<32x1xf32>, vector<8x1xf32> -> vector<8x1xf32>
    %c0_97 = arith.constant 0 : index
    %c0_98 = arith.constant 0 : index
    %482 = vector.load %arg12[%c0_97, %c0_98] : memref<1x1xf32, #tpu.memory_space<vmem>>, vector<1x1xf32>
    %483 = vector.broadcast %482 : vector<1x1xf32> to vector<8x1xf32>
    %484 = arith.addf %481, %483 : vector<8x1xf32>
    %c0_99 = arith.constant 0 : index
    %c0_100 = arith.constant 0 : index
    %485 = vector.load %arg13[%c0_99, %c0_100] : memref<8x1xf32, #tpu.memory_space<vmem>>, vector<8x1xf32>
    tpu.vector_store %arg13[%c0_99, %c0_100], %484 {strides = array<i32>} : memref<8x1xf32, #tpu.memory_space<vmem>>, vector<8x1xf32>,
    return
  }
}

</mosaic_0001>

<llo_original>
// kernel: _forward_impl.1
$region0: #{_forward_impl.1}
  #allocation0 [shape = 'u32[]', space=smem, size = 0x4, offset = 0x4, fixed_abs, tag = 'smem constant byte address 0x4 - core index']
  #allocation1 [shape = 'u32[144,128]{1,0:T(1,128)}', space=vmem, size = 0x12000, scoped, tag = 'internal scratch']
  #allocation2 [shape = 'f32[1,1]{1,0:T(1,128)S(1)}', space=vmem, size = 0x200, scoped, tag = 'scoped memory for _forward_impl.1']
  %s0 = inlined_call_operand.vmem [shape: f32[64,16], index: 0, kind: input, shape index: {}]
  %s1 = inlined_call_operand.vmem [shape: f32[16,128], index: 1, kind: input, shape index: {}]
  %s2 = inlined_call_operand.vmem [shape: f32[32,128], index: 2, kind: input, shape index: {}]
  %s3 = inlined_call_operand.vmem [shape: f32[1,128], index: 3, kind: input, shape index: {}]
  %s4 = inlined_call_operand.vmem [shape: f32[32,128], index: 4, kind: input, shape index: {}]
  %s5 = inlined_call_operand.vmem [shape: f32[32,128], index: 5, kind: input, shape index: {}]
  %s6 = inlined_call_operand.vmem [shape: f32[1,128], index: 6, kind: input, shape index: {}]
  %s7 = inlined_call_operand.vmem [shape: f32[32,64], index: 7, kind: input, shape index: {}]
  %s8 = inlined_call_operand.vmem [shape: f32[1,64], index: 8, kind: input, shape index: {}]
  %s9 = inlined_call_operand.vmem [shape: f32[64,32], index: 9, kind: input, shape index: {}]
  %s10 = inlined_call_operand.vmem [shape: f32[1,32], index: 10, kind: input, shape index: {}]
  %s11 = inlined_call_operand.vmem [shape: f32[32,1], index: 11, kind: input, shape index: {}]
  %s12 = inlined_call_operand.<no memory space> [shape: f32[1,1], index: 12, kind: input, shape index: {}]
  %s13 = inlined_call_operand.vmem [shape: f32[8,1], index: 13, kind: output, shape index: {}]
  %s14 = sld [smem:[#allocation0]]
  $region62: #{_forward_impl.1} parent=0
    _
  %s16 = ssub.s32 1, %s14
  %s17 = scalar_select 0, %s16, %s14
  %v18 = vstv %s12
  %19 = vst [vmem:[#allocation2] sm:$0x1] %v18
  // Predicated region
  $region2: #{_forward_impl.1} parent=0 // pred_check
    _
  $region3: #{_forward_impl.1} parent=0 // pred_check_branch
    %21 = sbr.rel (0) target = $region5
  $region4: #{_forward_impl.1} parent=0 // pred_region
    _
  $region5: #{_forward_impl.1} parent=0 // pred_fallthru
    _
  // Predicated region
  $region6: #{_forward_impl.1} parent=0 // pred_check
    _
  $region7: #{_forward_impl.1} parent=0 // pred_check_branch
    %23 = sbr.rel (0) target = $region9
  $region8: #{_forward_impl.1} parent=0 // pred_region
    _
  $region9: #{_forward_impl.1} parent=0 // pred_fallthru
    _
  // Predicated region
  $region10: #{_forward_impl.1} parent=0 // pred_check
    _
  $region11: #{_forward_impl.1} parent=0 // pred_check_branch
    %25 = sbr.rel (0) target = $region13
  $region12: #{_forward_impl.1} parent=0 // pred_region
    _
  $region13: #{_forward_impl.1} parent=0 // pred_fallthru
    _
  // Predicated region
  $region14: #{_forward_impl.1} parent=0 // pred_check
    _
  $region15: #{_forward_impl.1} parent=0 // pred_check_branch
    %27 = sbr.rel (0) target = $region17
  $region16: #{_forward_impl.1} parent=0 // pred_region
    _
  $region17: #{_forward_impl.1} parent=0 // pred_fallthru
    _
  // Predicated region
  $region18: #{_forward_impl.1} parent=0 // pred_check
    _
  $region19: #{_forward_impl.1} parent=0 // pred_check_branch
    %29 = sbr.rel (0) target = $region21
  $region20: #{_forward_impl.1} parent=0 // pred_region
    _
  $region21: #{_forward_impl.1} parent=0 // pred_fallthru
    _
  // Predicated region
  $region22: #{_forward_impl.1} parent=0 // pred_check
    _
  $region23: #{_forward_impl.1} parent=0 // pred_check_branch
    %31 = sbr.rel (0) target = $region25
  $region24: #{_forward_impl.1} parent=0 // pred_region
    _
  $region25: #{_forward_impl.1} parent=0 // pred_fallthru
    _
  // Predicated region
  $region26: #{_forward_impl.1} parent=0 // pred_check
    _
  $region27: #{_forward_impl.1} parent=0 // pred_check_branch
    %33 = sbr.rel (0) target = $region29
  $region28: #{_forward_impl.1} parent=0 // pred_region
    _
  $region29: #{_forward_impl.1} parent=0 // pred_fallthru
    _
  // Predicated region
  $region30: #{_forward_impl.1} parent=0 // pred_check
    _
  $region31: #{_forward_impl.1} parent=0 // pred_check_branch
    %35 = sbr.rel (0) target = $region33
  $region32: #{_forward_impl.1} parent=0 // pred_region
    _
  $region33: #{_forward_impl.1} parent=0 // pred_fallthru
    _
  // Predicated region
  $region34: #{_forward_impl.1} parent=0 // pred_check
    _
  $region35: #{_forward_impl.1} parent=0 // pred_check_branch
    %37 = sbr.rel (0) target = $region37
  $region36: #{_forward_impl.1} parent=0 // pred_region
    _
  $region37: #{_forward_impl.1} parent=0 // pred_fallthru
    _
  // Predicated region
  $region38: #{_forward_impl.1} parent=0 // pred_check
    _
  $region39: #{_forward_impl.1} parent=0 // pred_check_branch
    %39 = sbr.rel (0) target = $region41
  $region40: #{_forward_impl.1} parent=0 // pred_region
    _
  $region41: #{_forward_impl.1} parent=0 // pred_fallthru
    _
  // Predicated region
  $region42: #{_forward_impl.1} parent=0 // pred_check
    _
  $region43: #{_forward_impl.1} parent=0 // pred_check_branch
    %41 = sbr.rel (0) target = $region45
  $region44: #{_forward_impl.1} parent=0 // pred_region
    _
  $region45: #{_forward_impl.1} parent=0 // pred_fallthru
    _
  // Predicated region
  $region46: #{_forward_impl.1} parent=0 // pred_check
    _
  $region47: #{_forward_impl.1} parent=0 // pred_check_branch
    %43 = sbr.rel (0) target = $region49
  $region48: #{_forward_impl.1} parent=0 // pred_region
    _
  $region49: #{_forward_impl.1} parent=0 // pred_fallthru
    _
  // Predicated region
  $region50: #{_forward_impl.1} parent=0 // pred_check
    _
  $region51: #{_forward_impl.1} parent=0 // pred_check_branch
    %45 = sbr.rel (0) target = $region53
  $region52: #{_forward_impl.1} parent=0 // pred_region
    _
  $region53: #{_forward_impl.1} parent=0 // pred_fallthru
    _
  %v46 = vld [vmem:[%s0] sm:$0xff]
  %v47 = vld [vmem:[%s0 + $0x8] sm:$0xff]
  %v48 = vld [vmem:[%s0 + $0x10] sm:$0xff]
  %v49 = vld [vmem:[%s0 + $0x18] sm:$0xff]
  %v50 = vld [vmem:[%s0 + $0x20] sm:$0xff]
  %v51 = vld [vmem:[%s0 + $0x28] sm:$0xff]
  %v52 = vld [vmem:[%s0 + $0x30] sm:$0xff]
  %v53 = vld [vmem:[%s0 + $0x38] sm:$0xff]
  %v54 = vld [vmem:[%s1] sm:$0xff]
  %v55 = vld [vmem:[%s1 + $0x8] sm:$0xff]
  %v56 = vld [vmem:[%s2] sm:$0xff]
  %v57 = vld [vmem:[%s2 + $0x8] sm:$0xff]
  %v58 = vld [vmem:[%s2 + $0x10] sm:$0xff]
  %v59 = vld [vmem:[%s2 + $0x18] sm:$0xff]
  %v60 = vld [vmem:[%s3] sm:$0x1]
  %v62 = vlaneseq
  %v63 = vshrl.u32 %v62, 7
  %v64 = vsub.s32 0, %v63
  %v65 = vrot.slane %v60, %v64
  %vm67 = vcmask 130048
  %v69 = vsel %vm67, %v46, 0
  %v72 = vsel %vm67, %v47, 0
  %v75 = vsel %vm67, %v48, 0
  %v78 = vsel %vm67, %v49, 0
  %v81 = vsel %vm67, %v50, 0
  %v84 = vsel %vm67, %v51, 0
  %v87 = vsel %vm67, %v52, 0
  %v90 = vsel %vm67, %v53, 0
  %92 = vmatprep.subr.mxu0 0.0
  %93 = vmatpush1.msra.mxu0 %v54
  %94 = vmatprep.subr.mxu0 0.0
  %95 = vmatpush1.msra.mxu0 %v55
  %96 = vmatprep.subr.mxu0 0.0
  %97 = vmatpush1.msra.mxu0 0.0
  %98 = vmatprep.subr.mxu0 0.0
  %99 = vmatpush1.msra.mxu0 0.0
  %100 = vmatprep.subr.mxu0 0.0
  %101 = vmatpush1.msra.mxu0 0.0
  %102 = vmatprep.subr.mxu0 0.0
  %103 = vmatpush1.msra.mxu0 0.0
  %104 = vmatprep.subr.mxu0 0.0
  %105 = vmatpush1.msra.mxu0 0.0
  %106 = vmatprep.subr.mxu0 0.0
  %107 = vmatpush1.msra.mxu0 0.0
  %108 = vmatprep.subr.mxu0 0.0
  %109 = vmatpush1.msra.mxu0 0.0
  %110 = vmatprep.subr.mxu0 0.0
  %111 = vmatpush1.msra.mxu0 0.0
  %112 = vmatprep.subr.mxu0 0.0
  %113 = vmatpush1.msra.mxu0 0.0
  %114 = vmatprep.subr.mxu0 0.0
  %115 = vmatpush1.msra.mxu0 0.0
  %116 = vmatprep.subr.mxu0 0.0
  %117 = vmatpush1.msra.mxu0 0.0
  %118 = vmatprep.subr.mxu0 0.0
  %119 = vmatpush1.msra.mxu0 0.0
  %120 = vmatprep.subr.mxu0 0.0
  %121 = vmatpush1.msra.mxu0 0.0
  %122 = vmatprep.subr.mxu0 0.0
  %123 = vmatpush1.msra.mxu0 0.0
  %124 = vmatprep.subr.mxu0 0.0
  %125 = vmatpush1.msra.mxu0 0.0
  %126 = vmatprep.subr.mxu0 0.0
  %127 = vmatpush1.msra.mxu0 0.0
  %128 = vmatprep.subr.mxu0 0.0
  %129 = vmatpush1.msra.mxu0 0.0
  %130 = vmatprep.subr.mxu0 0.0
  %131 = vmatpush1.msra.mxu0 0.0
  %132 = vmatprep.subr.mxu0 0.0
  %133 = vmatpush1.msra.mxu0 0.0
  %134 = vmatprep.subr.mxu0 0.0
  %135 = vmatpush1.msra.mxu0 0.0
  %136 = vmatprep.subr.mxu0 0.0
  %137 = vmatpush1.msra.mxu0 0.0
  %138 = vmatprep.subr.mxu0 0.0
  %139 = vmatpush1.msra.mxu0 0.0
  %140 = vmatprep.subr.mxu0 0.0
  %141 = vmatpush1.msra.mxu0 0.0
  %142 = vmatprep.subr.mxu0 0.0
  %143 = vmatpush1.msra.mxu0 0.0
  %144 = vmatprep.subr.mxu0 0.0
  %145 = vmatpush1.msra.mxu0 0.0
  %146 = vmatprep.subr.mxu0 0.0
  %147 = vmatpush1.msra.mxu0 0.0
  %148 = vmatprep.subr.mxu0 0.0
  %149 = vmatpush1.msra.mxu0 0.0
  %150 = vmatprep.subr.mxu0 0.0
  %151 = vmatpush1.msra.mxu0 0.0
  %152 = vmatprep.subr.mxu0 0.0
  %153 = vmatpush1.msra.mxu0 0.0
  %154 = vmatprep.subr.mxu0 0.0
  %155 = vmatpush1.msra.mxu0 0.0
  %156 = vmatprep.mubr.f32.mxu0 0.0
  %157 = vmatmul.mubr.f32.gmra.mrb[0].mxu0 %v69
  %v158 = vpop.f32.mrb[0].mxu0
  %v159 = vadd.f32 %v65, %v158
  %v160 = vpop.f32.mrb[0].mxu0
  %161 = vmatprep.mubr.f32.mxu0 0.0
  %162 = vmatmul.mubr.f32.gmra.mrb[0].mxu0 %v72
  %v163 = vpop.f32.mrb[0].mxu0
  %v164 = vadd.f32 %v65, %v163
  %v165 = vpop.f32.mrb[0].mxu0
  %166 = vmatprep.mubr.f32.mxu0 0.0
  %167 = vmatmul.mubr.f32.gmra.mrb[0].mxu0 %v75
  %v168 = vpop.f32.mrb[0].mxu0
  %v169 = vadd.f32 %v65, %v168
  %v170 = vpop.f32.mrb[0].mxu0
  %171 = vmatprep.mubr.f32.mxu0 0.0
  %172 = vmatmul.mubr.f32.gmra.mrb[0].mxu0 %v78
  %v173 = vpop.f32.mrb[0].mxu0
  %v174 = vadd.f32 %v65, %v173
  %v175 = vpop.f32.mrb[0].mxu0
  %176 = vmatprep.mubr.f32.mxu0 0.0
  %177 = vmatmul.mubr.f32.gmra.mrb[0].mxu0 %v81
  %v178 = vpop.f32.mrb[0].mxu0
  %v179 = vadd.f32 %v65, %v178
  %v180 = vpop.f32.mrb[0].mxu0
  %181 = vmatprep.mubr.f32.mxu0 0.0
  %182 = vmatmul.mubr.f32.gmra.mrb[0].mxu0 %v84
  %v183 = vpop.f32.mrb[0].mxu0
  %v184 = vadd.f32 %v65, %v183
  %v185 = vpop.f32.mrb[0].mxu0
  %186 = vmatprep.mubr.f32.mxu0 0.0
  %187 = vmatmul.mubr.f32.gmra.mrb[0].mxu0 %v87
  %v188 = vpop.f32.mrb[0].mxu0
  %v189 = vadd.f32 %v65, %v188
  %v190 = vpop.f32.mrb[0].mxu0
  %191 = vmatprep.mubr.f32.mxu0 0.0
  %192 = vmatmul.mubr.f32.gmra.mrb[0].mxu0 %v90
  %v193 = vpop.f32.mrb[0].mxu0
  %v194 = vadd.f32 %v65, %v193
  %v195 = vpop.f32.mrb[0].mxu0
  %196 = vdwg.mxu0
  %vm197 = vcmask 261120
  %v199 = vsel %vm197, 0.0, 0
  %201 = vmatprep.subr.mxu0 0.0
  %202 = vmatpush1.msra.mxu0 %v56
  %203 = vmatprep.subr.mxu0 0.0
  %204 = vmatpush1.msra.mxu0 %v57
  %205 = vmatprep.subr.mxu0 0.0
  %206 = vmatpush1.msra.mxu0 %v58
  %207 = vmatprep.subr.mxu0 0.0
  %208 = vmatpush1.msra.mxu0 %v59
  %209 = vmatprep.subr.mxu0 0.0
  %210 = vmatpush1.msra.mxu0 0.0
  %211 = vmatprep.subr.mxu0 0.0
  %212 = vmatpush1.msra.mxu0 0.0
  %213 = vmatprep.subr.mxu0 0.0
  %214 = vmatpush1.msra.mxu0 0.0
  %215 = vmatprep.subr.mxu0 0.0
  %216 = vmatpush1.msra.mxu0 0.0
  %217 = vmatprep.subr.mxu0 0.0
  %218 = vmatpush1.msra.mxu0 0.0
  %219 = vmatprep.subr.mxu0 0.0
  %220 = vmatpush1.msra.mxu0 0.0
  %221 = vmatprep.subr.mxu0 0.0
  %222 = vmatpush1.msra.mxu0 0.0
  %223 = vmatprep.subr.mxu0 0.0
  %224 = vmatpush1.msra.mxu0 0.0
  %225 = vmatprep.subr.mxu0 0.0
  %226 = vmatpush1.msra.mxu0 0.0
  %227 = vmatprep.subr.mxu0 0.0
  %228 = vmatpush1.msra.mxu0 0.0
  %229 = vmatprep.subr.mxu0 0.0
  %230 = vmatpush1.msra.mxu0 0.0
  %231 = vmatprep.subr.mxu0 0.0
  %232 = vmatpush1.msra.mxu0 0.0
  %233 = vmatprep.subr.mxu0 0.0
  %234 = vmatpush1.msra.mxu0 0.0
  %235 = vmatprep.subr.mxu0 0.0
  %236 = vmatpush1.msra.mxu0 0.0
  %237 = vmatprep.subr.mxu0 0.0
  %238 = vmatpush1.msra.mxu0 0.0
  %239 = vmatprep.subr.mxu0 0.0
  %240 = vmatpush1.msra.mxu0 0.0
  %241 = vmatprep.subr.mxu0 0.0
  %242 = vmatpush1.msra.mxu0 0.0
  %243 = vmatprep.subr.mxu0 0.0
  %244 = vmatpush1.msra.mxu0 0.0
  %245 = vmatprep.subr.mxu0 0.0
  %246 = vmatpush1.msra.mxu0 0.0
  %247 = vmatprep.subr.mxu0 0.0
  %248 = vmatpush1.msra.mxu0 0.0
  %249 = vmatprep.subr.mxu0 0.0
  %250 = vmatpush1.msra.mxu0 0.0
  %251 = vmatprep.subr.mxu0 0.0
  %252 = vmatpush1.msra.mxu0 0.0
  %253 = vmatprep.subr.mxu0 0.0
  %254 = vmatpush1.msra.mxu0 0.0
  %255 = vmatprep.subr.mxu0 0.0
  %256 = vmatpush1.msra.mxu0 0.0
  %257 = vmatprep.subr.mxu0 0.0
  %258 = vmatpush1.msra.mxu0 0.0
  %259 = vmatprep.subr.mxu0 0.0
  %260 = vmatpush1.msra.mxu0 0.0
  %261 = vmatprep.subr.mxu0 0.0
  %262 = vmatpush1.msra.mxu0 0.0
  %263 = vmatprep.subr.mxu0 0.0
  %264 = vmatpush1.msra.mxu0 0.0
  %265 = vmatprep.mubr.f32.mxu0 0.0
  %266 = vmatmul.mubr.f32.gmra.mrb[0].mxu0 %v199
  %v267 = vpop.f32.mrb[0].mxu0
  %v268 = vadd.f32 0.0, %v267
  %v269 = vpop.f32.mrb[0].mxu0
  %270 = vdwg.mxu0
  %v271 = vadd.f32 %v159, %v268
  %v272 = vxor.u32 %v271, 2147483648
  %v273 = vmul.f32 %v272, 1.442695
  %v274 = vpow.pop %v273
  %v275 = vadd.f32 %v274, 1.0
  %v276 = vrcp.pop %v275
  %v277 = vmul.f32 1.0, %v276
  %v278 = vtanh.pop %v271
  %v279 = vmul.f32 %v277, 0.0
  %281 = vrot.lane.b32.xlu0 %v278, 64
  %v282 = vpop.permute.xlu0 %281
  %v284 = vmul.f32 %v277, %v282
  %286 = vrot.lane.b32.xlu0 %v284, 32
  %v287 = vpop.permute.xlu0 %286
  %v289 = vadd.f32 %v279, %v287
  %v290 = vtanh.pop %v289
  %292 = vrot.lane.b32.xlu0 %v290, 64
  %v293 = vpop.permute.xlu0 %292
  %v295 = vmul.f32 %v277, %v293
  %297 = vrot.lane.b32.xlu0 %v295, 32
  %v298 = vpop.permute.xlu0 %297
  %v299 = vsel %vm197, %v298, 0
  %301 = vmatprep.subr.mxu0 0.0
  %302 = vmatpush1.msra.mxu0 %v56
  %303 = vmatprep.subr.mxu0 0.0
  %304 = vmatpush1.msra.mxu0 %v57
  %305 = vmatprep.subr.mxu0 0.0
  %306 = vmatpush1.msra.mxu0 %v58
  %307 = vmatprep.subr.mxu0 0.0
  %308 = vmatpush1.msra.mxu0 %v59
  %309 = vmatprep.subr.mxu0 0.0
  %310 = vmatpush1.msra.mxu0 0.0
  %311 = vmatprep.subr.mxu0 0.0
  %312 = vmatpush1.msra.mxu0 0.0
  %313 = vmatprep.subr.mxu0 0.0
  %314 = vmatpush1.msra.mxu0 0.0
  %315 = vmatprep.subr.mxu0 0.0
  %316 = vmatpush1.msra.mxu0 0.0
  %317 = vmatprep.subr.mxu0 0.0
  %318 = vmatpush1.msra.mxu0 0.0
  %319 = vmatprep.subr.mxu0 0.0
  %320 = vmatpush1.msra.mxu0 0.0
  %321 = vmatprep.subr.mxu0 0.0
  %322 = vmatpush1.msra.mxu0 0.0
  %323 = vmatprep.subr.mxu0 0.0
  %324 = vmatpush1.msra.mxu0 0.0
  %325 = vmatprep.subr.mxu0 0.0
  %326 = vmatpush1.msra.mxu0 0.0
  %327 = vmatprep.subr.mxu0 0.0
  %328 = vmatpush1.msra.mxu0 0.0
  %329 = vmatprep.subr.mxu0 0.0
  %330 = vmatpush1.msra.mxu0 0.0
  %331 = vmatprep.subr.mxu0 0.0
  %332 = vmatpush1.msra.mxu0 0.0
  %333 = vmatprep.subr.mxu0 0.0
  %334 = vmatpush1.msra.mxu0 0.0
  %335 = vmatprep.subr.mxu0 0.0
  %336 = vmatpush1.msra.mxu0 0.0
  %337 = vmatprep.subr.mxu0 0.0
  %338 = vmatpush1.msra.mxu0 0.0
  %339 = vmatprep.subr.mxu0 0.0
  %340 = vmatpush1.msra.mxu0 0.0
  %341 = vmatprep.subr.mxu0 0.0
  %342 = vmatpush1.msra.mxu0 0.0
  %343 = vmatprep.subr.mxu0 0.0
  %344 = vmatpush1.msra.mxu0 0.0
  %345 = vmatprep.subr.mxu0 0.0
  %346 = vmatpush1.msra.mxu0 0.0
  %347 = vmatprep.subr.mxu0 0.0
  %348 = vmatpush1.msra.mxu0 0.0
  %349 = vmatprep.subr.mxu0 0.0
  %350 = vmatpush1.msra.mxu0 0.0
  %351 = vmatprep.subr.mxu0 0.0
  %352 = vmatpush1.msra.mxu0 0.0
  %353 = vmatprep.subr.mxu0 0.0
  %354 = vmatpush1.msra.mxu0 0.0
  %355 = vmatprep.subr.mxu0 0.0
  %356 = vmatpush1.msra.mxu0 0.0
  %357 = vmatprep.subr.mxu0 0.0
  %358 = vmatpush1.msra.mxu0 0.0
  %359 = vmatprep.subr.mxu0 0.0
  %360 = vmatpush1.msra.mxu0 0.0
  %361 = vmatprep.subr.mxu0 0.0
  %362 = vmatpush1.msra.mxu0 0.0
  %363 = vmatprep.subr.mxu0 0.0
  %364 = vmatpush1.msra.mxu0 0.0
  %365 = vmatprep.mubr.f32.mxu0 0.0
  %366 = vmatmul.mubr.f32.gmra.mrb[0].mxu0 %v299
  %v367 = vpop.f32.mrb[0].mxu0
  %v368 = vadd.f32 0.0, %v367
  %v369 = vpop.f32.mrb[0].mxu0
  %370 = vdwg.mxu0
  %v371 = vadd.f32 %v164, %v368
  %v372 = vxor.u32 %v371, 2147483648
  %v373 = vmul.f32 %v372, 1.442695
  %v374 = vpow.pop %v373
  %v375 = vadd.f32 %v374, 1.0
  %v376 = vrcp.pop %v375
  %v377 = vmul.f32 1.0, %v376
  %v378 = vtanh.pop %v371
  %v379 = vmul.f32 %v377, %v289
  %381 = vrot.lane.b32.xlu0 %v378, 64
  %v382 = vpop.permute.xlu0 %381
  %v384 = vmul.f32 %v377, %v382
  %386 = vrot.lane.b32.xlu0 %v384, 32
  %v387 = vpop.permute.xlu0 %386
  %v389 = vadd.f32 %v379, %v387
  %v390 = vtanh.pop %v389
  %392 = vrot.lane.b32.xlu0 %v390, 64
  %v393 = vpop.permute.xlu0 %392
  %v395 = vmul.f32 %v377, %v393
  %397 = vrot.lane.b32.xlu0 %v395, 32
  %v398 = vpop.permute.xlu0 %397
  %v399 = vsel %vm197, %v398, 0
  %401 = vmatprep.subr.mxu0 0.0
  %402 = vmatpush1.msra.mxu0 %v56
  %403 = vmatprep.subr.mxu0 0.0
  %404 = vmatpush1.msra.mxu0 %v57
  %405 = vmatprep.subr.mxu0 0.0
  %406 = vmatpush1.msra.mxu0 %v58
  %407 = vmatprep.subr.mxu0 0.0
  %408 = vmatpush1.msra.mxu0 %v59
  %409 = vmatprep.subr.mxu0 0.0
  %410 = vmatpush1.msra.mxu0 0.0
  %411 = vmatprep.subr.mxu0 0.0
  %412 = vmatpush1.msra.mxu0 0.0
  %413 = vmatprep.subr.mxu0 0.0
  %414 = vmatpush1.msra.mxu0 0.0
  %415 = vmatprep.subr.mxu0 0.0
  %416 = vmatpush1.msra.mxu0 0.0
  %417 = vmatprep.subr.mxu0 0.0
  %418 = vmatpush1.msra.mxu0 0.0
  %419 = vmatprep.subr.mxu0 0.0
  %420 = vmatpush1.msra.mxu0 0.0
  %421 = vmatprep.subr.mxu0 0.0
  %422 = vmatpush1.msra.mxu0 0.0
  %423 = vmatprep.subr.mxu0 0.0
  %424 = vmatpush1.msra.mxu0 0.0
  %425 = vmatprep.subr.mxu0 0.0
  %426 = vmatpush1.msra.mxu0 0.0
  %427 = vmatprep.subr.mxu0 0.0
  %428 = vmatpush1.msra.mxu0 0.0
  %429 = vmatprep.subr.mxu0 0.0
  %430 = vmatpush1.msra.mxu0 0.0
  %431 = vmatprep.subr.mxu0 0.0
  %432 = vmatpush1.msra.mxu0 0.0
  %433 = vmatprep.subr.mxu0 0.0
  %434 = vmatpush1.msra.mxu0 0.0
  %435 = vmatprep.subr.mxu0 0.0
  %436 = vmatpush1.msra.mxu0 0.0
  %437 = vmatprep.subr.mxu0 0.0
  %438 = vmatpush1.msra.mxu0 0.0
  %439 = vmatprep.subr.mxu0 0.0
  %440 = vmatpush1.msra.mxu0 0.0
  %441 = vmatprep.subr.mxu0 0.0
  %442 = vmatpush1.msra.mxu0 0.0
  %443 = vmatprep.subr.mxu0 0.0
  %444 = vmatpush1.msra.mxu0 0.0
  %445 = vmatprep.subr.mxu0 0.0
  %446 = vmatpush1.msra.mxu0 0.0
  %447 = vmatprep.subr.mxu0 0.0
  %448 = vmatpush1.msra.mxu0 0.0
  %449 = vmatprep.subr.mxu0 0.0
  %450 = vmatpush1.msra.mxu0 0.0
  %451 = vmatprep.subr.mxu0 0.0
  %452 = vmatpush1.msra.mxu0 0.0
  %453 = vmatprep.subr.mxu0 0.0
  %454 = vmatpush1.msra.mxu0 0.0
  %455 = vmatprep.subr.mxu0 0.0
  %456 = vmatpush1.msra.mxu0 0.0
  %457 = vmatprep.subr.mxu0 0.0
  %458 = vmatpush1.msra.mxu0 0.0
  %459 = vmatprep.subr.mxu0 0.0
  %460 = vmatpush1.msra.mxu0 0.0
  %461 = vmatprep.subr.mxu0 0.0
  %462 = vmatpush1.msra.mxu0 0.0
  %463 = vmatprep.subr.mxu0 0.0
  %464 = vmatpush1.msra.mxu0 0.0
  %465 = vmatprep.mubr.f32.mxu0 0.0
  %466 = vmatmul.mubr.f32.gmra.mrb[0].mxu0 %v399
  %v467 = vpop.f32.mrb[0].mxu0
  %v468 = vadd.f32 0.0, %v467
  %v469 = vpop.f32.mrb[0].mxu0
  %470 = vdwg.mxu0
  %v471 = vadd.f32 %v169, %v468
  %v472 = vxor.u32 %v471, 2147483648
  %v473 = vmul.f32 %v472, 1.442695
  %v474 = vpow.pop %v473
  %v475 = vadd.f32 %v474, 1.0
  %v476 = vrcp.pop %v475
  %v477 = vmul.f32 1.0, %v476
  %v478 = vtanh.pop %v471
  %v479 = vmul.f32 %v477, %v389
  %481 = vrot.lane.b32.xlu0 %v478, 64
  %v482 = vpop.permute.xlu0 %481
  %v484 = vmul.f32 %v477, %v482
  %486 = vrot.lane.b32.xlu0 %v484, 32
  %v487 = vpop.permute.xlu0 %486
  %v489 = vadd.f32 %v479, %v487
  %v490 = vtanh.pop %v489
  %492 = vrot.lane.b32.xlu0 %v490, 64
  %v493 = vpop.permute.xlu0 %492
  %v495 = vmul.f32 %v477, %v493
  %497 = vrot.lane.b32.xlu0 %v495, 32
  %v498 = vpop.permute.xlu0 %497
  %v499 = vsel %vm197, %v498, 0
  %501 = vmatprep.subr.mxu0 0.0
  %502 = vmatpush1.msra.mxu0 %v56
  %503 = vmatprep.subr.mxu0 0.0
  %504 = vmatpush1.msra.mxu0 %v57
  %505 = vmatprep.subr.mxu0 0.0
  %506 = vmatpush1.msra.mxu0 %v58
  %507 = vmatprep.subr.mxu0 0.0
  %508 = vmatpush1.msra.mxu0 %v59
  %509 = vmatprep.subr.mxu0 0.0
  %510 = vmatpush1.msra.mxu0 0.0
  %511 = vmatprep.subr.mxu0 0.0
  %512 = vmatpush1.msra.mxu0 0.0
  %513 = vmatprep.subr.mxu0 0.0
  %514 = vmatpush1.msra.mxu0 0.0
  %515 = vmatprep.subr.mxu0 0.0
  %516 = vmatpush1.msra.mxu0 0.0
  %517 = vmatprep.subr.mxu0 0.0
  %518 = vmatpush1.msra.mxu0 0.0
  %519 = vmatprep.subr.mxu0 0.0
  %520 = vmatpush1.msra.mxu0 0.0
  %521 = vmatprep.subr.mxu0 0.0
  %522 = vmatpush1.msra.mxu0 0.0
  %523 = vmatprep.subr.mxu0 0.0
  %524 = vmatpush1.msra.mxu0 0.0
  %525 = vmatprep.subr.mxu0 0.0
  %526 = vmatpush1.msra.mxu0 0.0
  %527 = vmatprep.subr.mxu0 0.0
  %528 = vmatpush1.msra.mxu0 0.0
  %529 = vmatprep.subr.mxu0 0.0
  %530 = vmatpush1.msra.mxu0 0.0
  %531 = vmatprep.subr.mxu0 0.0
  %532 = vmatpush1.msra.mxu0 0.0
  %533 = vmatprep.subr.mxu0 0.0
  %534 = vmatpush1.msra.mxu0 0.0
  %535 = vmatprep.subr.mxu0 0.0
  %536 = vmatpush1.msra.mxu0 0.0
  %537 = vmatprep.subr.mxu0 0.0
  %538 = vmatpush1.msra.mxu0 0.0
  %539 = vmatprep.subr.mxu0 0.0
  %540 = vmatpush1.msra.mxu0 0.0
  %541 = vmatprep.subr.mxu0 0.0
  %542 = vmatpush1.msra.mxu0 0.0
  %543 = vmatprep.subr.mxu0 0.0
  %544 = vmatpush1.msra.mxu0 0.0
  %545 = vmatprep.subr.mxu0 0.0
  %546 = vmatpush1.msra.mxu0 0.0
  %547 = vmatprep.subr.mxu0 0.0
  %548 = vmatpush1.msra.mxu0 0.0
  %549 = vmatprep.subr.mxu0 0.0
  %550 = vmatpush1.msra.mxu0 0.0
  %551 = vmatprep.subr.mxu0 0.0
  %552 = vmatpush1.msra.mxu0 0.0
  %553 = vmatprep.subr.mxu0 0.0
  %554 = vmatpush1.msra.mxu0 0.0
  %555 = vmatprep.subr.mxu0 0.0
  %556 = vmatpush1.msra.mxu0 0.0
  %557 = vmatprep.subr.mxu0 0.0
  %558 = vmatpush1.msra.mxu0 0.0
  %559 = vmatprep.subr.mxu0 0.0
  %560 = vmatpush1.msra.mxu0 0.0
  %561 = vmatprep.subr.mxu0 0.0
  %562 = vmatpush1.msra.mxu0 0.0
  %563 = vmatprep.subr.mxu0 0.0
  %564 = vmatpush1.msra.mxu0 0.0
  %565 = vmatprep.mubr.f32.mxu0 0.0
  %566 = vmatmul.mubr.f32.gmra.mrb[0].mxu0 %v499
  %v567 = vpop.f32.mrb[0].mxu0
  %v568 = vadd.f32 0.0, %v567
  %v569 = vpop.f32.mrb[0].mxu0
  %570 = vdwg.mxu0
  %v571 = vadd.f32 %v174, %v568
  %v572 = vxor.u32 %v571, 2147483648
  %v573 = vmul.f32 %v572, 1.442695
  %v574 = vpow.pop %v573
  %v575 = vadd.f32 %v574, 1.0
  %v576 = vrcp.pop %v575
  %v577 = vmul.f32 1.0, %v576
  %v578 = vtanh.pop %v571
  %v579 = vmul.f32 %v577, %v489
  %581 = vrot.lane.b32.xlu0 %v578, 64
  %v582 = vpop.permute.xlu0 %581
  %v584 = vmul.f32 %v577, %v582
  %586 = vrot.lane.b32.xlu0 %v584, 32
  %v587 = vpop.permute.xlu0 %586
  %v589 = vadd.f32 %v579, %v587
  %v590 = vtanh.pop %v589
  %592 = vrot.lane.b32.xlu0 %v590, 64
  %v593 = vpop.permute.xlu0 %592
  %v595 = vmul.f32 %v577, %v593
  %597 = vrot.lane.b32.xlu0 %v595, 32
  %v598 = vpop.permute.xlu0 %597
  %v599 = vsel %vm197, %v598, 0
  %601 = vmatprep.subr.mxu0 0.0
  %602 = vmatpush1.msra.mxu0 %v56
  %603 = vmatprep.subr.mxu0 0.0
  %604 = vmatpush1.msra.mxu0 %v57
  %605 = vmatprep.subr.mxu0 0.0
  %606 = vmatpush1.msra.mxu0 %v58
  %607 = vmatprep.subr.mxu0 0.0
  %608 = vmatpush1.msra.mxu0 %v59
  %609 = vmatprep.subr.mxu0 0.0
  %610 = vmatpush1.msra.mxu0 0.0
  %611 = vmatprep.subr.mxu0 0.0
  %612 = vmatpush1.msra.mxu0 0.0
  %613 = vmatprep.subr.mxu0 0.0
  %614 = vmatpush1.msra.mxu0 0.0
  %615 = vmatprep.subr.mxu0 0.0
  %616 = vmatpush1.msra.mxu0 0.0
  %617 = vmatprep.subr.mxu0 0.0
  %618 = vmatpush1.msra.mxu0 0.0
  %619 = vmatprep.subr.mxu0 0.0
  %620 = vmatpush1.msra.mxu0 0.0
  %621 = vmatprep.subr.mxu0 0.0
  %622 = vmatpush1.msra.mxu0 0.0
  %623 = vmatprep.subr.mxu0 0.0
  %624 = vmatpush1.msra.mxu0 0.0
  %625 = vmatprep.subr.mxu0 0.0
  %626 = vmatpush1.msra.mxu0 0.0
  %627 = vmatprep.subr.mxu0 0.0
  %628 = vmatpush1.msra.mxu0 0.0
  %629 = vmatprep.subr.mxu0 0.0
  %630 = vmatpush1.msra.mxu0 0.0
  %631 = vmatprep.subr.mxu0 0.0
  %632 = vmatpush1.msra.mxu0 0.0
  %633 = vmatprep.subr.mxu0 0.0
  %634 = vmatpush1.msra.mxu0 0.0
  %635 = vmatprep.subr.mxu0 0.0
  %636 = vmatpush1.msra.mxu0 0.0
  %637 = vmatprep.subr.mxu0 0.0
  %638 = vmatpush1.msra.mxu0 0.0
  %639 = vmatprep.subr.mxu0 0.0
  %640 = vmatpush1.msra.mxu0 0.0
  %641 = vmatprep.subr.mxu0 0.0
  %642 = vmatpush1.msra.mxu0 0.0
  %643 = vmatprep.subr.mxu0 0.0
  %644 = vmatpush1.msra.mxu0 0.0
  %645 = vmatprep.subr.mxu0 0.0
  %646 = vmatpush1.msra.mxu0 0.0
  %647 = vmatprep.subr.mxu0 0.0
  %648 = vmatpush1.msra.mxu0 0.0
  %649 = vmatprep.subr.mxu0 0.0
  %650 = vmatpush1.msra.mxu0 0.0
  %651 = vmatprep.subr.mxu0 0.0
  %652 = vmatpush1.msra.mxu0 0.0
  %653 = vmatprep.subr.mxu0 0.0
  %654 = vmatpush1.msra.mxu0 0.0
  %655 = vmatprep.subr.mxu0 0.0
  %656 = vmatpush1.msra.mxu0 0.0
  %657 = vmatprep.subr.mxu0 0.0
  %658 = vmatpush1.msra.mxu0 0.0
  %659 = vmatprep.subr.mxu0 0.0
  %660 = vmatpush1.msra.mxu0 0.0
  %661 = vmatprep.subr.mxu0 0.0
  %662 = vmatpush1.msra.mxu0 0.0
  %663 = vmatprep.subr.mxu0 0.0
  %664 = vmatpush1.msra.mxu0 0.0
  %665 = vmatprep.mubr.f32.mxu0 0.0
  %666 = vmatmul.mubr.f32.gmra.mrb[0].mxu0 %v599
  %v667 = vpop.f32.mrb[0].mxu0
  %v668 = vadd.f32 0.0, %v667
  %v669 = vpop.f32.mrb[0].mxu0
  %670 = vdwg.mxu0
  %v671 = vadd.f32 %v179, %v668
  %v672 = vxor.u32 %v671, 2147483648
  %v673 = vmul.f32 %v672, 1.442695
  %v674 = vpow.pop %v673
  %v675 = vadd.f32 %v674, 1.0
  %v676 = vrcp.pop %v675
  %v677 = vmul.f32 1.0, %v676
  %v678 = vtanh.pop %v671
  %v679 = vmul.f32 %v677, %v589
  %681 = vrot.lane.b32.xlu0 %v678, 64
  %v682 = vpop.permute.xlu0 %681
  %v684 = vmul.f32 %v677, %v682
  %686 = vrot.lane.b32.xlu0 %v684, 32
  %v687 = vpop.permute.xlu0 %686
  %v689 = vadd.f32 %v679, %v687
  %v690 = vtanh.pop %v689
  %692 = vrot.lane.b32.xlu0 %v690, 64
  %v693 = vpop.permute.xlu0 %692
  %v695 = vmul.f32 %v677, %v693
  %697 = vrot.lane.b32.xlu0 %v695, 32
  %v698 = vpop.permute.xlu0 %697
  %v699 = vsel %vm197, %v698, 0
  %701 = vmatprep.subr.mxu0 0.0
  %702 = vmatpush1.msra.mxu0 %v56
  %703 = vmatprep.subr.mxu0 0.0
  %704 = vmatpush1.msra.mxu0 %v57
  %705 = vmatprep.subr.mxu0 0.0
  %706 = vmatpush1.msra.mxu0 %v58
  %707 = vmatprep.subr.mxu0 0.0
  %708 = vmatpush1.msra.mxu0 %v59
  %709 = vmatprep.subr.mxu0 0.0
  %710 = vmatpush1.msra.mxu0 0.0
  %711 = vmatprep.subr.mxu0 0.0
  %712 = vmatpush1.msra.mxu0 0.0
  %713 = vmatprep.subr.mxu0 0.0
  %714 = vmatpush1.msra.mxu0 0.0
  %715 = vmatprep.subr.mxu0 0.0
  %716 = vmatpush1.msra.mxu0 0.0
  %717 = vmatprep.subr.mxu0 0.0
  %718 = vmatpush1.msra.mxu0 0.0
  %719 = vmatprep.subr.mxu0 0.0
  %720 = vmatpush1.msra.mxu0 0.0
  %721 = vmatprep.subr.mxu0 0.0
  %722 = vmatpush1.msra.mxu0 0.0
  %723 = vmatprep.subr.mxu0 0.0
  %724 = vmatpush1.msra.mxu0 0.0
  %725 = vmatprep.subr.mxu0 0.0
  %726 = vmatpush1.msra.mxu0 0.0
  %727 = vmatprep.subr.mxu0 0.0
  %728 = vmatpush1.msra.mxu0 0.0
  %729 = vmatprep.subr.mxu0 0.0
  %730 = vmatpush1.msra.mxu0 0.0
  %731 = vmatprep.subr.mxu0 0.0
  %732 = vmatpush1.msra.mxu0 0.0
  %733 = vmatprep.subr.mxu0 0.0
  %734 = vmatpush1.msra.mxu0 0.0
  %735 = vmatprep.subr.mxu0 0.0
  %736 = vmatpush1.msra.mxu0 0.0
  %737 = vmatprep.subr.mxu0 0.0
  %738 = vmatpush1.msra.mxu0 0.0
  %739 = vmatprep.subr.mxu0 0.0
  %740 = vmatpush1.msra.mxu0 0.0
  %741 = vmatprep.subr.mxu0 0.0
  %742 = vmatpush1.msra.mxu0 0.0
  %743 = vmatprep.subr.mxu0 0.0
  %744 = vmatpush1.msra.mxu0 0.0
  %745 = vmatprep.subr.mxu0 0.0
  %746 = vmatpush1.msra.mxu0 0.0
  %747 = vmatprep.subr.mxu0 0.0
  %748 = vmatpush1.msra.mxu0 0.0
  %749 = vmatprep.subr.mxu0 0.0
  %750 = vmatpush1.msra.mxu0 0.0
  %751 = vmatprep.subr.mxu0 0.0
  %752 = vmatpush1.msra.mxu0 0.0
  %753 = vmatprep.subr.mxu0 0.0
  %754 = vmatpush1.msra.mxu0 0.0
  %755 = vmatprep.subr.mxu0 0.0
  %756 = vmatpush1.msra.mxu0 0.0
  %757 = vmatprep.subr.mxu0 0.0
  %758 = vmatpush1.msra.mxu0 0.0
  %759 = vmatprep.subr.mxu0 0.0
  %760 = vmatpush1.msra.mxu0 0.0
  %761 = vmatprep.subr.mxu0 0.0
  %762 = vmatpush1.msra.mxu0 0.0
  %763 = vmatprep.subr.mxu0 0.0
  %764 = vmatpush1.msra.mxu0 0.0
  %765 = vmatprep.mubr.f32.mxu0 0.0
  %766 = vmatmul.mubr.f32.gmra.mrb[0].mxu0 %v699
  %v767 = vpop.f32.mrb[0].mxu0
  %v768 = vadd.f32 0.0, %v767
  %v769 = vpop.f32.mrb[0].mxu0
  %770 = vdwg.mxu0
  %v771 = vadd.f32 %v184, %v768
  %v772 = vxor.u32 %v771, 2147483648
  %v773 = vmul.f32 %v772, 1.442695
  %v774 = vpow.pop %v773
  %v775 = vadd.f32 %v774, 1.0
  %v776 = vrcp.pop %v775
  %v777 = vmul.f32 1.0, %v776
  %v778 = vtanh.pop %v771
  %v779 = vmul.f32 %v777, %v689
  %781 = vrot.lane.b32.xlu0 %v778, 64
  %v782 = vpop.permute.xlu0 %781
  %v784 = vmul.f32 %v777, %v782
  %786 = vrot.lane.b32.xlu0 %v784, 32
  %v787 = vpop.permute.xlu0 %786
  %v789 = vadd.f32 %v779, %v787
  %v790 = vtanh.pop %v789
  %792 = vrot.lane.b32.xlu0 %v790, 64
  %v793 = vpop.permute.xlu0 %792
  %v795 = vmul.f32 %v777, %v793
  %797 = vrot.lane.b32.xlu0 %v795, 32
  %v798 = vpop.permute.xlu0 %797
  %v799 = vsel %vm197, %v798, 0
  %801 = vmatprep.subr.mxu0 0.0
  %802 = vmatpush1.msra.mxu0 %v56
  %803 = vmatprep.subr.mxu0 0.0
  %804 = vmatpush1.msra.mxu0 %v57
  %805 = vmatprep.subr.mxu0 0.0
  %806 = vmatpush1.msra.mxu0 %v58
  %807 = vmatprep.subr.mxu0 0.0
  %808 = vmatpush1.msra.mxu0 %v59
  %809 = vmatprep.subr.mxu0 0.0
  %810 = vmatpush1.msra.mxu0 0.0
  %811 = vmatprep.subr.mxu0 0.0
  %812 = vmatpush1.msra.mxu0 0.0
  %813 = vmatprep.subr.mxu0 0.0
  %814 = vmatpush1.msra.mxu0 0.0
  %815 = vmatprep.subr.mxu0 0.0
  %816 = vmatpush1.msra.mxu0 0.0
  %817 = vmatprep.subr.mxu0 0.0
  %818 = vmatpush1.msra.mxu0 0.0
  %819 = vmatprep.subr.mxu0 0.0
  %820 = vmatpush1.msra.mxu0 0.0
  %821 = vmatprep.subr.mxu0 0.0
  %822 = vmatpush1.msra.mxu0 0.0
  %823 = vmatprep.subr.mxu0 0.0
  %824 = vmatpush1.msra.mxu0 0.0
  %825 = vmatprep.subr.mxu0 0.0
  %826 = vmatpush1.msra.mxu0 0.0
  %827 = vmatprep.subr.mxu0 0.0
  %828 = vmatpush1.msra.mxu0 0.0
  %829 = vmatprep.subr.mxu0 0.0
  %830 = vmatpush1.msra.mxu0 0.0
  %831 = vmatprep.subr.mxu0 0.0
  %832 = vmatpush1.msra.mxu0 0.0
  %833 = vmatprep.subr.mxu0 0.0
  %834 = vmatpush1.msra.mxu0 0.0
  %835 = vmatprep.subr.mxu0 0.0
  %836 = vmatpush1.msra.mxu0 0.0
  %837 = vmatprep.subr.mxu0 0.0
  %838 = vmatpush1.msra.mxu0 0.0
  %839 = vmatprep.subr.mxu0 0.0
  %840 = vmatpush1.msra.mxu0 0.0
  %841 = vmatprep.subr.mxu0 0.0
  %842 = vmatpush1.msra.mxu0 0.0
  %843 = vmatprep.subr.mxu0 0.0
  %844 = vmatpush1.msra.mxu0 0.0
  %845 = vmatprep.subr.mxu0 0.0
  %846 = vmatpush1.msra.mxu0 0.0
  %847 = vmatprep.subr.mxu0 0.0
  %848 = vmatpush1.msra.mxu0 0.0
  %849 = vmatprep.subr.mxu0 0.0
  %850 = vmatpush1.msra.mxu0 0.0
  %851 = vmatprep.subr.mxu0 0.0
  %852 = vmatpush1.msra.mxu0 0.0
  %853 = vmatprep.subr.mxu0 0.0
  %854 = vmatpush1.msra.mxu0 0.0
  %855 = vmatprep.subr.mxu0 0.0
  %856 = vmatpush1.msra.mxu0 0.0
  %857 = vmatprep.subr.mxu0 0.0
  %858 = vmatpush1.msra.mxu0 0.0
  %859 = vmatprep.subr.mxu0 0.0
  %860 = vmatpush1.msra.mxu0 0.0
  %861 = vmatprep.subr.mxu0 0.0
  %862 = vmatpush1.msra.mxu0 0.0
  %863 = vmatprep.subr.mxu0 0.0
  %864 = vmatpush1.msra.mxu0 0.0
  %865 = vmatprep.mubr.f32.mxu0 0.0
  %866 = vmatmul.mubr.f32.gmra.mrb[0].mxu0 %v799
  %v867 = vpop.f32.mrb[0].mxu0
  %v868 = vadd.f32 0.0, %v867
  %v869 = vpop.f32.mrb[0].mxu0
  %870 = vdwg.mxu0
  %v871 = vadd.f32 %v189, %v868
  %v872 = vxor.u32 %v871, 2147483648
  %v873 = vmul.f32 %v872, 1.442695
  %v874 = vpow.pop %v873
  %v875 = vadd.f32 %v874, 1.0
  %v876 = vrcp.pop %v875
  %v877 = vmul.f32 1.0, %v876
  %v878 = vtanh.pop %v871
  %v879 = vmul.f32 %v877, %v789
  %881 = vrot.lane.b32.xlu0 %v878, 64
  %v882 = vpop.permute.xlu0 %881
  %v884 = vmul.f32 %v877, %v882
  %886 = vrot.lane.b32.xlu0 %v884, 32
  %v887 = vpop.permute.xlu0 %886
  %v889 = vadd.f32 %v879, %v887
  %v890 = vtanh.pop %v889
  %892 = vrot.lane.b32.xlu0 %v890, 64
  %v893 = vpop.permute.xlu0 %892
  %v895 = vmul.f32 %v877, %v893
  %897 = vrot.lane.b32.xlu0 %v895, 32
  %v898 = vpop.permute.xlu0 %897
  %v899 = vsel %vm197, %v898, 0
  %901 = vmatprep.subr.mxu0 0.0
  %902 = vmatpush1.msra.mxu0 %v56
  %903 = vmatprep.subr.mxu0 0.0
  %904 = vmatpush1.msra.mxu0 %v57
  %905 = vmatprep.subr.mxu0 0.0
  %906 = vmatpush1.msra.mxu0 %v58
  %907 = vmatprep.subr.mxu0 0.0
  %908 = vmatpush1.msra.mxu0 %v59
  %909 = vmatprep.subr.mxu0 0.0
  %910 = vmatpush1.msra.mxu0 0.0
  %911 = vmatprep.subr.mxu0 0.0
  %912 = vmatpush1.msra.mxu0 0.0
  %913 = vmatprep.subr.mxu0 0.0
  %914 = vmatpush1.msra.mxu0 0.0
  %915 = vmatprep.subr.mxu0 0.0
  %916 = vmatpush1.msra.mxu0 0.0
  %917 = vmatprep.subr.mxu0 0.0
  %918 = vmatpush1.msra.mxu0 0.0
  %919 = vmatprep.subr.mxu0 0.0
  %920 = vmatpush1.msra.mxu0 0.0
  %921 = vmatprep.subr.mxu0 0.0
  %922 = vmatpush1.msra.mxu0 0.0
  %923 = vmatprep.subr.mxu0 0.0
  %924 = vmatpush1.msra.mxu0 0.0
  %925 = vmatprep.subr.mxu0 0.0
  %926 = vmatpush1.msra.mxu0 0.0
  %927 = vmatprep.subr.mxu0 0.0
  %928 = vmatpush1.msra.mxu0 0.0
  %929 = vmatprep.subr.mxu0 0.0
  %930 = vmatpush1.msra.mxu0 0.0
  %931 = vmatprep.subr.mxu0 0.0
  %932 = vmatpush1.msra.mxu0 0.0
  %933 = vmatprep.subr.mxu0 0.0
  %934 = vmatpush1.msra.mxu0 0.0
  %935 = vmatprep.subr.mxu0 0.0
  %936 = vmatpush1.msra.mxu0 0.0
  %937 = vmatprep.subr.mxu0 0.0
  %938 = vmatpush1.msra.mxu0 0.0
  %939 = vmatprep.subr.mxu0 0.0
  %940 = vmatpush1.msra.mxu0 0.0
  %941 = vmatprep.subr.mxu0 0.0
  %942 = vmatpush1.msra.mxu0 0.0
  %943 = vmatprep.subr.mxu0 0.0
  %944 = vmatpush1.msra.mxu0 0.0
  %945 = vmatprep.subr.mxu0 0.0
  %946 = vmatpush1.msra.mxu0 0.0
  %947 = vmatprep.subr.mxu0 0.0
  %948 = vmatpush1.msra.mxu0 0.0
  %949 = vmatprep.subr.mxu0 0.0
  %950 = vmatpush1.msra.mxu0 0.0
  %951 = vmatprep.subr.mxu0 0.0
  %952 = vmatpush1.msra.mxu0 0.0
  %953 = vmatprep.subr.mxu0 0.0
  %954 = vmatpush1.msra.mxu0 0.0
  %955 = vmatprep.subr.mxu0 0.0
  %956 = vmatpush1.msra.mxu0 0.0
  %957 = vmatprep.subr.mxu0 0.0
  %958 = vmatpush1.msra.mxu0 0.0
  %959 = vmatprep.subr.mxu0 0.0
  %960 = vmatpush1.msra.mxu0 0.0
  %961 = vmatprep.subr.mxu0 0.0
  %962 = vmatpush1.msra.mxu0 0.0
  %963 = vmatprep.subr.mxu0 0.0
  %964 = vmatpush1.msra.mxu0 0.0
  %965 = vmatprep.mubr.f32.mxu0 0.0
  %966 = vmatmul.mubr.f32.gmra.mrb[0].mxu0 %v899
  %v967 = vpop.f32.mrb[0].mxu0
  %v968 = vadd.f32 0.0, %v967
  %v969 = vpop.f32.mrb[0].mxu0
  %970 = vdwg.mxu0
  %v971 = vadd.f32 %v194, %v968
  %v972 = vxor.u32 %v971, 2147483648
  %v973 = vmul.f32 %v972, 1.442695
  %v974 = vpow.pop %v973
  %v975 = vadd.f32 %v974, 1.0
  %v976 = vrcp.pop %v975
  %v977 = vmul.f32 1.0, %v976
  %v978 = vtanh.pop %v971
  %v979 = vmul.f32 %v977, %v889
  %981 = vrot.lane.b32.xlu0 %v978, 64
  %v982 = vpop.permute.xlu0 %981
  %v984 = vmul.f32 %v977, %v982
  %986 = vrot.lane.b32.xlu0 %v984, 32
  %v987 = vpop.permute.xlu0 %986
  %v989 = vadd.f32 %v979, %v987
  %v990 = vtanh.pop %v989
  %992 = vrot.lane.b32.xlu0 %v990, 64
  %v993 = vpop.permute.xlu0 %992
  %v995 = vmul.f32 %v977, %v993
  %v996 = vld [vmem:[%s4] sm:$0xff]
  %v997 = vld [vmem:[%s4 + $0x8] sm:$0xff]
  %v998 = vld [vmem:[%s4 + $0x10] sm:$0xff]
  %v999 = vld [vmem:[%s4 + $0x18] sm:$0xff]
  %v1000 = vld [vmem:[%s5] sm:$0xff]
  %v1001 = vld [vmem:[%s5 + $0x8] sm:$0xff]
  %v1002 = vld [vmem:[%s5 + $0x10] sm:$0xff]
  %v1003 = vld [vmem:[%s5 + $0x18] sm:$0xff]
  %v1004 = vld [vmem:[%s6] sm:$0x1]
  %v1006 = vlaneseq
  %v1007 = vshrl.u32 %v1006, 7
  %v1008 = vsub.s32 0, %v1007
  %v1009 = vrot.slane %v1004, %v1008
  %1012 = vrot.lane.b32.xlu0 %v995, 32
  %v1013 = vpop.permute.xlu0 %1012
  %v1014 = vsel %vm197, %v1013, 0
  %1016 = vmatprep.subr.mxu0 0.0
  %1017 = vmatpush1.msra.mxu0 %v996
  %1018 = vmatprep.subr.mxu0 0.0
  %1019 = vmatpush1.msra.mxu0 %v997
  %1020 = vmatprep.subr.mxu0 0.0
  %1021 = vmatpush1.msra.mxu0 %v998
  %1022 = vmatprep.subr.mxu0 0.0
  %1023 = vmatpush1.msra.mxu0 %v999
  %1024 = vmatprep.subr.mxu0 0.0
  %1025 = vmatpush1.msra.mxu0 0.0
  %1026 = vmatprep.subr.mxu0 0.0
  %1027 = vmatpush1.msra.mxu0 0.0
  %1028 = vmatprep.subr.mxu0 0.0
  %1029 = vmatpush1.msra.mxu0 0.0
  %1030 = vmatprep.subr.mxu0 0.0
  %1031 = vmatpush1.msra.mxu0 0.0
  %1032 = vmatprep.subr.mxu0 0.0
  %1033 = vmatpush1.msra.mxu0 0.0
  %1034 = vmatprep.subr.mxu0 0.0
  %1035 = vmatpush1.msra.mxu0 0.0
  %1036 = vmatprep.subr.mxu0 0.0
  %1037 = vmatpush1.msra.mxu0 0.0
  %1038 = vmatprep.subr.mxu0 0.0
  %1039 = vmatpush1.msra.mxu0 0.0
  %1040 = vmatprep.subr.mxu0 0.0
  %1041 = vmatpush1.msra.mxu0 0.0
  %1042 = vmatprep.subr.mxu0 0.0
  %1043 = vmatpush1.msra.mxu0 0.0
  %1044 = vmatprep.subr.mxu0 0.0
  %1045 = vmatpush1.msra.mxu0 0.0
  %1046 = vmatprep.subr.mxu0 0.0
  %1047 = vmatpush1.msra.mxu0 0.0
  %1048 = vmatprep.subr.mxu0 0.0
  %1049 = vmatpush1.msra.mxu0 0.0
  %1050 = vmatprep.subr.mxu0 0.0
  %1051 = vmatpush1.msra.mxu0 0.0
  %1052 = vmatprep.subr.mxu0 0.0
  %1053 = vmatpush1.msra.mxu0 0.0
  %1054 = vmatprep.subr.mxu0 0.0
  %1055 = vmatpush1.msra.mxu0 0.0
  %1056 = vmatprep.subr.mxu0 0.0
  %1057 = vmatpush1.msra.mxu0 0.0
  %1058 = vmatprep.subr.mxu0 0.0
  %1059 = vmatpush1.msra.mxu0 0.0
  %1060 = vmatprep.subr.mxu0 0.0
  %1061 = vmatpush1.msra.mxu0 0.0
  %1062 = vmatprep.subr.mxu0 0.0
  %1063 = vmatpush1.msra.mxu0 0.0
  %1064 = vmatprep.subr.mxu0 0.0
  %1065 = vmatpush1.msra.mxu0 0.0
  %1066 = vmatprep.subr.mxu0 0.0
  %1067 = vmatpush1.msra.mxu0 0.0
  %1068 = vmatprep.subr.mxu0 0.0
  %1069 = vmatpush1.msra.mxu0 0.0
  %1070 = vmatprep.subr.mxu0 0.0
  %1071 = vmatpush1.msra.mxu0 0.0
  %1072 = vmatprep.subr.mxu0 0.0
  %1073 = vmatpush1.msra.mxu0 0.0
  %1074 = vmatprep.subr.mxu0 0.0
  %1075 = vmatpush1.msra.mxu0 0.0
  %1076 = vmatprep.subr.mxu0 0.0
  %1077 = vmatpush1.msra.mxu0 0.0
  %1078 = vmatprep.subr.mxu0 0.0
  %1079 = vmatpush1.msra.mxu0 0.0
  %1080 = vmatprep.mubr.f32.mxu0 0.0
  %1081 = vmatmul.mubr.f32.gmra.mrb[0].mxu0 %v299
  %v1082 = vpop.f32.mrb[0].mxu0
  %v1083 = vadd.f32 %v1009, %v1082
  %v1084 = vpop.f32.mrb[0].mxu0
  %1085 = vmatprep.mubr.f32.mxu0 0.0
  %1086 = vmatmul.mubr.f32.gmra.mrb[0].mxu0 %v399
  %v1087 = vpop.f32.mrb[0].mxu0
  %v1088 = vadd.f32 %v1009, %v1087
  %v1089 = vpop.f32.mrb[0].mxu0
  %1090 = vmatprep.mubr.f32.mxu0 0.0
  %1091 = vmatmul.mubr.f32.gmra.mrb[0].mxu0 %v499
  %v1092 = vpop.f32.mrb[0].mxu0
  %v1093 = vadd.f32 %v1009, %v1092
  %v1094 = vpop.f32.mrb[0].mxu0
  %1095 = vmatprep.mubr.f32.mxu0 0.0
  %1096 = vmatmul.mubr.f32.gmra.mrb[0].mxu0 %v599
  %v1097 = vpop.f32.mrb[0].mxu0
  %v1098 = vadd.f32 %v1009, %v1097
  %v1099 = vpop.f32.mrb[0].mxu0
  %1100 = vmatprep.mubr.f32.mxu0 0.0
  %1101 = vmatmul.mubr.f32.gmra.mrb[0].mxu0 %v699
  %v1102 = vpop.f32.mrb[0].mxu0
  %v1103 = vadd.f32 %v1009, %v1102
  %v1104 = vpop.f32.mrb[0].mxu0
  %1105 = vmatprep.mubr.f32.mxu0 0.0
  %1106 = vmatmul.mubr.f32.gmra.mrb[0].mxu0 %v799
  %v1107 = vpop.f32.mrb[0].mxu0
  %v1108 = vadd.f32 %v1009, %v1107
  %v1109 = vpop.f32.mrb[0].mxu0
  %1110 = vmatprep.mubr.f32.mxu0 0.0
  %1111 = vmatmul.mubr.f32.gmra.mrb[0].mxu0 %v899
  %v1112 = vpop.f32.mrb[0].mxu0
  %v1113 = vadd.f32 %v1009, %v1112
  %v1114 = vpop.f32.mrb[0].mxu0
  %1115 = vmatprep.mubr.f32.mxu0 0.0
  %1116 = vmatmul.mubr.f32.gmra.mrb[0].mxu0 %v1014
  %v1117 = vpop.f32.mrb[0].mxu0
  %v1118 = vadd.f32 %v1009, %v1117
  %v1119 = vpop.f32.mrb[0].mxu0
  %1120 = vdwg.mxu0
  %1121 = vmatprep.subr.mxu0 0.0
  %1122 = vmatpush1.msra.mxu0 %v1000
  %1123 = vmatprep.subr.mxu0 0.0
  %1124 = vmatpush1.msra.mxu0 %v1001
  %1125 = vmatprep.subr.mxu0 0.0
  %1126 = vmatpush1.msra.mxu0 %v1002
  %1127 = vmatprep.subr.mxu0 0.0
  %1128 = vmatpush1.msra.mxu0 %v1003
  %1129 = vmatprep.subr.mxu0 0.0
  %1130 = vmatpush1.msra.mxu0 0.0
  %1131 = vmatprep.subr.mxu0 0.0
  %1132 = vmatpush1.msra.mxu0 0.0
  %1133 = vmatprep.subr.mxu0 0.0
  %1134 = vmatpush1.msra.mxu0 0.0
  %1135 = vmatprep.subr.mxu0 0.0
  %1136 = vmatpush1.msra.mxu0 0.0
  %1137 = vmatprep.subr.mxu0 0.0
  %1138 = vmatpush1.msra.mxu0 0.0
  %1139 = vmatprep.subr.mxu0 0.0
  %1140 = vmatpush1.msra.mxu0 0.0
  %1141 = vmatprep.subr.mxu0 0.0
  %1142 = vmatpush1.msra.mxu0 0.0
  %1143 = vmatprep.subr.mxu0 0.0
  %1144 = vmatpush1.msra.mxu0 0.0
  %1145 = vmatprep.subr.mxu0 0.0
  %1146 = vmatpush1.msra.mxu0 0.0
  %1147 = vmatprep.subr.mxu0 0.0
  %1148 = vmatpush1.msra.mxu0 0.0
  %1149 = vmatprep.subr.mxu0 0.0
  %1150 = vmatpush1.msra.mxu0 0.0
  %1151 = vmatprep.subr.mxu0 0.0
  %1152 = vmatpush1.msra.mxu0 0.0
  %1153 = vmatprep.subr.mxu0 0.0
  %1154 = vmatpush1.msra.mxu0 0.0
  %1155 = vmatprep.subr.mxu0 0.0
  %1156 = vmatpush1.msra.mxu0 0.0
  %1157 = vmatprep.subr.mxu0 0.0
  %1158 = vmatpush1.msra.mxu0 0.0
  %1159 = vmatprep.subr.mxu0 0.0
  %1160 = vmatpush1.msra.mxu0 0.0
  %1161 = vmatprep.subr.mxu0 0.0
  %1162 = vmatpush1.msra.mxu0 0.0
  %1163 = vmatprep.subr.mxu0 0.0
  %1164 = vmatpush1.msra.mxu0 0.0
  %1165 = vmatprep.subr.mxu0 0.0
  %1166 = vmatpush1.msra.mxu0 0.0
  %1167 = vmatprep.subr.mxu0 0.0
  %1168 = vmatpush1.msra.mxu0 0.0
  %1169 = vmatprep.subr.mxu0 0.0
  %1170 = vmatpush1.msra.mxu0 0.0
  %1171 = vmatprep.subr.mxu0 0.0
  %1172 = vmatpush1.msra.mxu0 0.0
  %1173 = vmatprep.subr.mxu0 0.0
  %1174 = vmatpush1.msra.mxu0 0.0
  %1175 = vmatprep.subr.mxu0 0.0
  %1176 = vmatpush1.msra.mxu0 0.0
  %1177 = vmatprep.subr.mxu0 0.0
  %1178 = vmatpush1.msra.mxu0 0.0
  %1179 = vmatprep.subr.mxu0 0.0
  %1180 = vmatpush1.msra.mxu0 0.0
  %1181 = vmatprep.subr.mxu0 0.0
  %1182 = vmatpush1.msra.mxu0 0.0
  %1183 = vmatprep.subr.mxu0 0.0
  %1184 = vmatpush1.msra.mxu0 0.0
  %1185 = vmatprep.mubr.f32.mxu0 0.0
  %1186 = vmatmul.mubr.f32.gmra.mrb[0].mxu0 %v199
  %v1187 = vpop.f32.mrb[0].mxu0
  %v1188 = vadd.f32 0.0, %v1187
  %v1189 = vpop.f32.mrb[0].mxu0
  %1190 = vdwg.mxu0
  %v1191 = vadd.f32 %v1083, %v1188
  %v1192 = vxor.u32 %v1191, 2147483648
  %v1193 = vmul.f32 %v1192, 1.442695
  %v1194 = vpow.pop %v1193
  %v1195 = vadd.f32 %v1194, 1.0
  %v1196 = vrcp.pop %v1195
  %v1197 = vmul.f32 1.0, %v1196
  %v1198 = vtanh.pop %v1191
  %v1199 = vmul.f32 %v1197, 0.0
  %1201 = vrot.lane.b32.xlu0 %v1198, 64
  %v1202 = vpop.permute.xlu0 %1201
  %v1204 = vmul.f32 %v1197, %v1202
  %1206 = vrot.lane.b32.xlu0 %v1204, 32
  %v1207 = vpop.permute.xlu0 %1206
  %v1209 = vadd.f32 %v1199, %v1207
  %v1210 = vtanh.pop %v1209
  %1212 = vrot.lane.b32.xlu0 %v1210, 64
  %v1213 = vpop.permute.xlu0 %1212
  %v1215 = vmul.f32 %v1197, %v1213
  %1217 = vrot.lane.b32.xlu0 %v1215, 32
  %v1218 = vpop.permute.xlu0 %1217
  %v1219 = vsel %vm197, %v1218, 0
  %1221 = vmatprep.subr.mxu0 0.0
  %1222 = vmatpush1.msra.mxu0 %v1000
  %1223 = vmatprep.subr.mxu0 0.0
  %1224 = vmatpush1.msra.mxu0 %v1001
  %1225 = vmatprep.subr.mxu0 0.0
  %1226 = vmatpush1.msra.mxu0 %v1002
  %1227 = vmatprep.subr.mxu0 0.0
  %1228 = vmatpush1.msra.mxu0 %v1003
  %1229 = vmatprep.subr.mxu0 0.0
  %1230 = vmatpush1.msra.mxu0 0.0
  %1231 = vmatprep.subr.mxu0 0.0
  %1232 = vmatpush1.msra.mxu0 0.0
  %1233 = vmatprep.subr.mxu0 0.0
  %1234 = vmatpush1.msra.mxu0 0.0
  %1235 = vmatprep.subr.mxu0 0.0
  %1236 = vmatpush1.msra.mxu0 0.0
  %1237 = vmatprep.subr.mxu0 0.0
  %1238 = vmatpush1.msra.mxu0 0.0
  %1239 = vmatprep.subr.mxu0 0.0
  %1240 = vmatpush1.msra.mxu0 0.0
  %1241 = vmatprep.subr.mxu0 0.0
  %1242 = vmatpush1.msra.mxu0 0.0
  %1243 = vmatprep.subr.mxu0 0.0
  %1244 = vmatpush1.msra.mxu0 0.0
  %1245 = vmatprep.subr.mxu0 0.0
  %1246 = vmatpush1.msra.mxu0 0.0
  %1247 = vmatprep.subr.mxu0 0.0
  %1248 = vmatpush1.msra.mxu0 0.0
  %1249 = vmatprep.subr.mxu0 0.0
  %1250 = vmatpush1.msra.mxu0 0.0
  %1251 = vmatprep.subr.mxu0 0.0
  %1252 = vmatpush1.msra.mxu0 0.0
  %1253 = vmatprep.subr.mxu0 0.0
  %1254 = vmatpush1.msra.mxu0 0.0
  %1255 = vmatprep.subr.mxu0 0.0
  %1256 = vmatpush1.msra.mxu0 0.0
  %1257 = vmatprep.subr.mxu0 0.0
  %1258 = vmatpush1.msra.mxu0 0.0
  %1259 = vmatprep.subr.mxu0 0.0
  %1260 = vmatpush1.msra.mxu0 0.0
  %1261 = vmatprep.subr.mxu0 0.0
  %1262 = vmatpush1.msra.mxu0 0.0
  %1263 = vmatprep.subr.mxu0 0.0
  %1264 = vmatpush1.msra.mxu0 0.0
  %1265 = vmatprep.subr.mxu0 0.0
  %1266 = vmatpush1.msra.mxu0 0.0
  %1267 = vmatprep.subr.mxu0 0.0
  %1268 = vmatpush1.msra.mxu0 0.0
  %1269 = vmatprep.subr.mxu0 0.0
  %1270 = vmatpush1.msra.mxu0 0.0
  %1271 = vmatprep.subr.mxu0 0.0
  %1272 = vmatpush1.msra.mxu0 0.0
  %1273 = vmatprep.subr.mxu0 0.0
  %1274 = vmatpush1.msra.mxu0 0.0
  %1275 = vmatprep.subr.mxu0 0.0
  %1276 = vmatpush1.msra.mxu0 0.0
  %1277 = vmatprep.subr.mxu0 0.0
  %1278 = vmatpush1.msra.mxu0 0.0
  %1279 = vmatprep.subr.mxu0 0.0
  %1280 = vmatpush1.msra.mxu0 0.0
  %1281 = vmatprep.subr.mxu0 0.0
  %1282 = vmatpush1.msra.mxu0 0.0
  %1283 = vmatprep.subr.mxu0 0.0
  %1284 = vmatpush1.msra.mxu0 0.0
  %1285 = vmatprep.mubr.f32.mxu0 0.0
  %1286 = vmatmul.mubr.f32.gmra.mrb[0].mxu0 %v1219
  %v1287 = vpop.f32.mrb[0].mxu0
  %v1288 = vadd.f32 0.0, %v1287
  %v1289 = vpop.f32.mrb[0].mxu0
  %1290 = vdwg.mxu0
  %v1291 = vadd.f32 %v1088, %v1288
  %v1292 = vxor.u32 %v1291, 2147483648
  %v1293 = vmul.f32 %v1292, 1.442695
  %v1294 = vpow.pop %v1293
  %v1295 = vadd.f32 %v1294, 1.0
  %v1296 = vrcp.pop %v1295
  %v1297 = vmul.f32 1.0, %v1296
  %v1298 = vtanh.pop %v1291
  %v1299 = vmul.f32 %v1297, %v1209
  %1301 = vrot.lane.b32.xlu0 %v1298, 64
  %v1302 = vpop.permute.xlu0 %1301
  %v1304 = vmul.f32 %v1297, %v1302
  %1306 = vrot.lane.b32.xlu0 %v1304, 32
  %v1307 = vpop.permute.xlu0 %1306
  %v1309 = vadd.f32 %v1299, %v1307
  %v1310 = vtanh.pop %v1309
  %1312 = vrot.lane.b32.xlu0 %v1310, 64
  %v1313 = vpop.permute.xlu0 %1312
  %v1315 = vmul.f32 %v1297, %v1313
  %1317 = vrot.lane.b32.xlu0 %v1315, 32
  %v1318 = vpop.permute.xlu0 %1317
  %v1319 = vsel %vm197, %v1318, 0
  %1321 = vmatprep.subr.mxu0 0.0
  %1322 = vmatpush1.msra.mxu0 %v1000
  %1323 = vmatprep.subr.mxu0 0.0
  %1324 = vmatpush1.msra.mxu0 %v1001
  %1325 = vmatprep.subr.mxu0 0.0
  %1326 = vmatpush1.msra.mxu0 %v1002
  %1327 = vmatprep.subr.mxu0 0.0
  %1328 = vmatpush1.msra.mxu0 %v1003
  %1329 = vmatprep.subr.mxu0 0.0
  %1330 = vmatpush1.msra.mxu0 0.0
  %1331 = vmatprep.subr.mxu0 0.0
  %1332 = vmatpush1.msra.mxu0 0.0
  %1333 = vmatprep.subr.mxu0 0.0
  %1334 = vmatpush1.msra.mxu0 0.0
  %1335 = vmatprep.subr.mxu0 0.0
  %1336 = vmatpush1.msra.mxu0 0.0
  %1337 = vmatprep.subr.mxu0 0.0
  %1338 = vmatpush1.msra.mxu0 0.0
  %1339 = vmatprep.subr.mxu0 0.0
  %1340 = vmatpush1.msra.mxu0 0.0
  %1341 = vmatprep.subr.mxu0 0.0
  %1342 = vmatpush1.msra.mxu0 0.0
  %1343 = vmatprep.subr.mxu0 0.0
  %1344 = vmatpush1.msra.mxu0 0.0
  %1345 = vmatprep.subr.mxu0 0.0
  %1346 = vmatpush1.msra.mxu0 0.0
  %1347 = vmatprep.subr.mxu0 0.0
  %1348 = vmatpush1.msra.mxu0 0.0
  %1349 = vmatprep.subr.mxu0 0.0
  %1350 = vmatpush1.msra.mxu0 0.0
  %1351 = vmatprep.subr.mxu0 0.0
  %1352 = vmatpush1.msra.mxu0 0.0
  %1353 = vmatprep.subr.mxu0 0.0
  %1354 = vmatpush1.msra.mxu0 0.0
  %1355 = vmatprep.subr.mxu0 0.0
  %1356 = vmatpush1.msra.mxu0 0.0
  %1357 = vmatprep.subr.mxu0 0.0
  %1358 = vmatpush1.msra.mxu0 0.0
  %1359 = vmatprep.subr.mxu0 0.0
  %1360 = vmatpush1.msra.mxu0 0.0
  %1361 = vmatprep.subr.mxu0 0.0
  %1362 = vmatpush1.msra.mxu0 0.0
  %1363 = vmatprep.subr.mxu0 0.0
  %1364 = vmatpush1.msra.mxu0 0.0
  %1365 = vmatprep.subr.mxu0 0.0
  %1366 = vmatpush1.msra.mxu0 0.0
  %1367 = vmatprep.subr.mxu0 0.0
  %1368 = vmatpush1.msra.mxu0 0.0
  %1369 = vmatprep.subr.mxu0 0.0
  %1370 = vmatpush1.msra.mxu0 0.0
  %1371 = vmatprep.subr.mxu0 0.0
  %1372 = vmatpush1.msra.mxu0 0.0
  %1373 = vmatprep.subr.mxu0 0.0
  %1374 = vmatpush1.msra.mxu0 0.0
  %1375 = vmatprep.subr.mxu0 0.0
  %1376 = vmatpush1.msra.mxu0 0.0
  %1377 = vmatprep.subr.mxu0 0.0
  %1378 = vmatpush1.msra.mxu0 0.0
  %1379 = vmatprep.subr.mxu0 0.0
  %1380 = vmatpush1.msra.mxu0 0.0
  %1381 = vmatprep.subr.mxu0 0.0
  %1382 = vmatpush1.msra.mxu0 0.0
  %1383 = vmatprep.subr.mxu0 0.0
  %1384 = vmatpush1.msra.mxu0 0.0
  %1385 = vmatprep.mubr.f32.mxu0 0.0
  %1386 = vmatmul.mubr.f32.gmra.mrb[0].mxu0 %v1319
  %v1387 = vpop.f32.mrb[0].mxu0
  %v1388 = vadd.f32 0.0, %v1387
  %v1389 = vpop.f32.mrb[0].mxu0
  %1390 = vdwg.mxu0
  %v1391 = vadd.f32 %v1093, %v1388
  %v1392 = vxor.u32 %v1391, 2147483648
  %v1393 = vmul.f32 %v1392, 1.442695
  %v1394 = vpow.pop %v1393
  %v1395 = vadd.f32 %v1394, 1.0
  %v1396 = vrcp.pop %v1395
  %v1397 = vmul.f32 1.0, %v1396
  %v1398 = vtanh.pop %v1391
  %v1399 = vmul.f32 %v1397, %v1309
  %1401 = vrot.lane.b32.xlu0 %v1398, 64
  %v1402 = vpop.permute.xlu0 %1401
  %v1404 = vmul.f32 %v1397, %v1402
  %1406 = vrot.lane.b32.xlu0 %v1404, 32
  %v1407 = vpop.permute.xlu0 %1406
  %v1409 = vadd.f32 %v1399, %v1407
  %v1410 = vtanh.pop %v1409
  %1412 = vrot.lane.b32.xlu0 %v1410, 64
  %v1413 = vpop.permute.xlu0 %1412
  %v1415 = vmul.f32 %v1397, %v1413
  %1417 = vrot.lane.b32.xlu0 %v1415, 32
  %v1418 = vpop.permute.xlu0 %1417
  %v1419 = vsel %vm197, %v1418, 0
  %1421 = vmatprep.subr.mxu0 0.0
  %1422 = vmatpush1.msra.mxu0 %v1000
  %1423 = vmatprep.subr.mxu0 0.0
  %1424 = vmatpush1.msra.mxu0 %v1001
  %1425 = vmatprep.subr.mxu0 0.0
  %1426 = vmatpush1.msra.mxu0 %v1002
  %1427 = vmatprep.subr.mxu0 0.0
  %1428 = vmatpush1.msra.mxu0 %v1003
  %1429 = vmatprep.subr.mxu0 0.0
  %1430 = vmatpush1.msra.mxu0 0.0
  %1431 = vmatprep.subr.mxu0 0.0
  %1432 = vmatpush1.msra.mxu0 0.0
  %1433 = vmatprep.subr.mxu0 0.0
  %1434 = vmatpush1.msra.mxu0 0.0
  %1435 = vmatprep.subr.mxu0 0.0
  %1436 = vmatpush1.msra.mxu0 0.0
  %1437 = vmatprep.subr.mxu0 0.0
  %1438 = vmatpush1.msra.mxu0 0.0
  %1439 = vmatprep.subr.mxu0 0.0
  %1440 = vmatpush1.msra.mxu0 0.0
  %1441 = vmatprep.subr.mxu0 0.0
  %1442 = vmatpush1.msra.mxu0 0.0
  %1443 = vmatprep.subr.mxu0 0.0
  %1444 = vmatpush1.msra.mxu0 0.0
  %1445 = vmatprep.subr.mxu0 0.0
  %1446 = vmatpush1.msra.mxu0 0.0
  %1447 = vmatprep.subr.mxu0 0.0
  %1448 = vmatpush1.msra.mxu0 0.0
  %1449 = vmatprep.subr.mxu0 0.0
  %1450 = vmatpush1.msra.mxu0 0.0
  %1451 = vmatprep.subr.mxu0 0.0
  %1452 = vmatpush1.msra.mxu0 0.0
  %1453 = vmatprep.subr.mxu0 0.0
  %1454 = vmatpush1.msra.mxu0 0.0
  %1455 = vmatprep.subr.mxu0 0.0
  %1456 = vmatpush1.msra.mxu0 0.0
  %1457 = vmatprep.subr.mxu0 0.0
  %1458 = vmatpush1.msra.mxu0 0.0
  %1459 = vmatprep.subr.mxu0 0.0
  %1460 = vmatpush1.msra.mxu0 0.0
  %1461 = vmatprep.subr.mxu0 0.0
  %1462 = vmatpush1.msra.mxu0 0.0
  %1463 = vmatprep.subr.mxu0 0.0
  %1464 = vmatpush1.msra.mxu0 0.0
  %1465 = vmatprep.subr.mxu0 0.0
  %1466 = vmatpush1.msra.mxu0 0.0
  %1467 = vmatprep.subr.mxu0 0.0
  %1468 = vmatpush1.msra.mxu0 0.0
  %1469 = vmatprep.subr.mxu0 0.0
  %1470 = vmatpush1.msra.mxu0 0.0
  %1471 = vmatprep.subr.mxu0 0.0
  %1472 = vmatpush1.msra.mxu0 0.0
  %1473 = vmatprep.subr.mxu0 0.0
  %1474 = vmatpush1.msra.mxu0 0.0
  %1475 = vmatprep.subr.mxu0 0.0
  %1476 = vmatpush1.msra.mxu0 0.0
  %1477 = vmatprep.subr.mxu0 0.0
  %1478 = vmatpush1.msra.mxu0 0.0
  %1479 = vmatprep.subr.mxu0 0.0
  %1480 = vmatpush1.msra.mxu0 0.0
  %1481 = vmatprep.subr.mxu0 0.0
  %1482 = vmatpush1.msra.mxu0 0.0
  %1483 = vmatprep.subr.mxu0 0.0
  %1484 = vmatpush1.msra.mxu0 0.0
  %1485 = vmatprep.mubr.f32.mxu0 0.0
  %1486 = vmatmul.mubr.f32.gmra.mrb[0].mxu0 %v1419
  %v1487 = vpop.f32.mrb[0].mxu0
  %v1488 = vadd.f32 0.0, %v1487
  %v1489 = vpop.f32.mrb[0].mxu0
  %1490 = vdwg.mxu0
  %v1491 = vadd.f32 %v1098, %v1488
  %v1492 = vxor.u32 %v1491, 2147483648
  %v1493 = vmul.f32 %v1492, 1.442695
  %v1494 = vpow.pop %v1493
  %v1495 = vadd.f32 %v1494, 1.0
  %v1496 = vrcp.pop %v1495
  %v1497 = vmul.f32 1.0, %v1496
  %v1498 = vtanh.pop %v1491
  %v1499 = vmul.f32 %v1497, %v1409
  %1501 = vrot.lane.b32.xlu0 %v1498, 64
  %v1502 = vpop.permute.xlu0 %1501
  %v1504 = vmul.f32 %v1497, %v1502
  %1506 = vrot.lane.b32.xlu0 %v1504, 32
  %v1507 = vpop.permute.xlu0 %1506
  %v1509 = vadd.f32 %v1499, %v1507
  %v1510 = vtanh.pop %v1509
  %1512 = vrot.lane.b32.xlu0 %v1510, 64
  %v1513 = vpop.permute.xlu0 %1512
  %v1515 = vmul.f32 %v1497, %v1513
  %1517 = vrot.lane.b32.xlu0 %v1515, 32
  %v1518 = vpop.permute.xlu0 %1517
  %v1519 = vsel %vm197, %v1518, 0
  %1521 = vmatprep.subr.mxu0 0.0
  %1522 = vmatpush1.msra.mxu0 %v1000
  %1523 = vmatprep.subr.mxu0 0.0
  %1524 = vmatpush1.msra.mxu0 %v1001
  %1525 = vmatprep.subr.mxu0 0.0
  %1526 = vmatpush1.msra.mxu0 %v1002
  %1527 = vmatprep.subr.mxu0 0.0
  %1528 = vmatpush1.msra.mxu0 %v1003
  %1529 = vmatprep.subr.mxu0 0.0
  %1530 = vmatpush1.msra.mxu0 0.0
  %1531 = vmatprep.subr.mxu0 0.0
  %1532 = vmatpush1.msra.mxu0 0.0
  %1533 = vmatprep.subr.mxu0 0.0
  %1534 = vmatpush1.msra.mxu0 0.0
  %1535 = vmatprep.subr.mxu0 0.0
  %1536 = vmatpush1.msra.mxu0 0.0
  %1537 = vmatprep.subr.mxu0 0.0
  %1538 = vmatpush1.msra.mxu0 0.0
  %1539 = vmatprep.subr.mxu0 0.0
  %1540 = vmatpush1.msra.mxu0 0.0
  %1541 = vmatprep.subr.mxu0 0.0
  %1542 = vmatpush1.msra.mxu0 0.0
  %1543 = vmatprep.subr.mxu0 0.0
  %1544 = vmatpush1.msra.mxu0 0.0
  %1545 = vmatprep.subr.mxu0 0.0
  %1546 = vmatpush1.msra.mxu0 0.0
  %1547 = vmatprep.subr.mxu0 0.0
  %1548 = vmatpush1.msra.mxu0 0.0
  %1549 = vmatprep.subr.mxu0 0.0
  %1550 = vmatpush1.msra.mxu0 0.0
  %1551 = vmatprep.subr.mxu0 0.0
  %1552 = vmatpush1.msra.mxu0 0.0
  %1553 = vmatprep.subr.mxu0 0.0
  %1554 = vmatpush1.msra.mxu0 0.0
  %1555 = vmatprep.subr.mxu0 0.0
  %1556 = vmatpush1.msra.mxu0 0.0
  %1557 = vmatprep.subr.mxu0 0.0
  %1558 = vmatpush1.msra.mxu0 0.0
  %1559 = vmatprep.subr.mxu0 0.0
  %1560 = vmatpush1.msra.mxu0 0.0
  %1561 = vmatprep.subr.mxu0 0.0
  %1562 = vmatpush1.msra.mxu0 0.0
  %1563 = vmatprep.subr.mxu0 0.0
  %1564 = vmatpush1.msra.mxu0 0.0
  %1565 = vmatprep.subr.mxu0 0.0
  %1566 = vmatpush1.msra.mxu0 0.0
  %1567 = vmatprep.subr.mxu0 0.0
  %1568 = vmatpush1.msra.mxu0 0.0
  %1569 = vmatprep.subr.mxu0 0.0
  %1570 = vmatpush1.msra.mxu0 0.0
  %1571 = vmatprep.subr.mxu0 0.0
  %1572 = vmatpush1.msra.mxu0 0.0
  %1573 = vmatprep.subr.mxu0 0.0
  %1574 = vmatpush1.msra.mxu0 0.0
  %1575 = vmatprep.subr.mxu0 0.0
  %1576 = vmatpush1.msra.mxu0 0.0
  %1577 = vmatprep.subr.mxu0 0.0
  %1578 = vmatpush1.msra.mxu0 0.0
  %1579 = vmatprep.subr.mxu0 0.0
  %1580 = vmatpush1.msra.mxu0 0.0
  %1581 = vmatprep.subr.mxu0 0.0
  %1582 = vmatpush1.msra.mxu0 0.0
  %1583 = vmatprep.subr.mxu0 0.0
  %1584 = vmatpush1.msra.mxu0 0.0
  %1585 = vmatprep.mubr.f32.mxu0 0.0
  %1586 = vmatmul.mubr.f32.gmra.mrb[0].mxu0 %v1519
  %v1587 = vpop.f32.mrb[0].mxu0
  %v1588 = vadd.f32 0.0, %v1587
  %v1589 = vpop.f32.mrb[0].mxu0
  %1590 = vdwg.mxu0
  %v1591 = vadd.f32 %v1103, %v1588
  %v1592 = vxor.u32 %v1591, 2147483648
  %v1593 = vmul.f32 %v1592, 1.442695
  %v1594 = vpow.pop %v1593
  %v1595 = vadd.f32 %v1594, 1.0
  %v1596 = vrcp.pop %v1595
  %v1597 = vmul.f32 1.0, %v1596
  %v1598 = vtanh.pop %v1591
  %v1599 = vmul.f32 %v1597, %v1509
  %1601 = vrot.lane.b32.xlu0 %v1598, 64
  %v1602 = vpop.permute.xlu0 %1601
  %v1604 = vmul.f32 %v1597, %v1602
  %1606 = vrot.lane.b32.xlu0 %v1604, 32
  %v1607 = vpop.permute.xlu0 %1606
  %v1609 = vadd.f32 %v1599, %v1607
  %v1610 = vtanh.pop %v1609
  %1612 = vrot.lane.b32.xlu0 %v1610, 64
  %v1613 = vpop.permute.xlu0 %1612
  %v1615 = vmul.f32 %v1597, %v1613
  %1617 = vrot.lane.b32.xlu0 %v1615, 32
  %v1618 = vpop.permute.xlu0 %1617
  %v1619 = vsel %vm197, %v1618, 0
  %1621 = vmatprep.subr.mxu0 0.0
  %1622 = vmatpush1.msra.mxu0 %v1000
  %1623 = vmatprep.subr.mxu0 0.0
  %1624 = vmatpush1.msra.mxu0 %v1001
  %1625 = vmatprep.subr.mxu0 0.0
  %1626 = vmatpush1.msra.mxu0 %v1002
  %1627 = vmatprep.subr.mxu0 0.0
  %1628 = vmatpush1.msra.mxu0 %v1003
  %1629 = vmatprep.subr.mxu0 0.0
  %1630 = vmatpush1.msra.mxu0 0.0
  %1631 = vmatprep.subr.mxu0 0.0
  %1632 = vmatpush1.msra.mxu0 0.0
  %1633 = vmatprep.subr.mxu0 0.0
  %1634 = vmatpush1.msra.mxu0 0.0
  %1635 = vmatprep.subr.mxu0 0.0
  %1636 = vmatpush1.msra.mxu0 0.0
  %1637 = vmatprep.subr.mxu0 0.0
  %1638 = vmatpush1.msra.mxu0 0.0
  %1639 = vmatprep.subr.mxu0 0.0
  %1640 = vmatpush1.msra.mxu0 0.0
  %1641 = vmatprep.subr.mxu0 0.0
  %1642 = vmatpush1.msra.mxu0 0.0
  %1643 = vmatprep.subr.mxu0 0.0
  %1644 = vmatpush1.msra.mxu0 0.0
  %1645 = vmatprep.subr.mxu0 0.0
  %1646 = vmatpush1.msra.mxu0 0.0
  %1647 = vmatprep.subr.mxu0 0.0
  %1648 = vmatpush1.msra.mxu0 0.0
  %1649 = vmatprep.subr.mxu0 0.0
  %1650 = vmatpush1.msra.mxu0 0.0
  %1651 = vmatprep.subr.mxu0 0.0
  %1652 = vmatpush1.msra.mxu0 0.0
  %1653 = vmatprep.subr.mxu0 0.0
  %1654 = vmatpush1.msra.mxu0 0.0
  %1655 = vmatprep.subr.mxu0 0.0
  %1656 = vmatpush1.msra.mxu0 0.0
  %1657 = vmatprep.subr.mxu0 0.0
  %1658 = vmatpush1.msra.mxu0 0.0
  %1659 = vmatprep.subr.mxu0 0.0
  %1660 = vmatpush1.msra.mxu0 0.0
  %1661 = vmatprep.subr.mxu0 0.0
  %1662 = vmatpush1.msra.mxu0 0.0
  %1663 = vmatprep.subr.mxu0 0.0
  %1664 = vmatpush1.msra.mxu0 0.0
  %1665 = vmatprep.subr.mxu0 0.0
  %1666 = vmatpush1.msra.mxu0 0.0
  %1667 = vmatprep.subr.mxu0 0.0
  %1668 = vmatpush1.msra.mxu0 0.0
  %1669 = vmatprep.subr.mxu0 0.0
  %1670 = vmatpush1.msra.mxu0 0.0
  %1671 = vmatprep.subr.mxu0 0.0
  %1672 = vmatpush1.msra.mxu0 0.0
  %1673 = vmatprep.subr.mxu0 0.0
  %1674 = vmatpush1.msra.mxu0 0.0
  %1675 = vmatprep.subr.mxu0 0.0
  %1676 = vmatpush1.msra.mxu0 0.0
  %1677 = vmatprep.subr.mxu0 0.0
  %1678 = vmatpush1.msra.mxu0 0.0
  %1679 = vmatprep.subr.mxu0 0.0
  %1680 = vmatpush1.msra.mxu0 0.0
  %1681 = vmatprep.subr.mxu0 0.0
  %1682 = vmatpush1.msra.mxu0 0.0
  %1683 = vmatprep.subr.mxu0 0.0
  %1684 = vmatpush1.msra.mxu0 0.0
  %1685 = vmatprep.mubr.f32.mxu0 0.0
  %1686 = vmatmul.mubr.f32.gmra.mrb[0].mxu0 %v1619
  %v1687 = vpop.f32.mrb[0].mxu0
  %v1688 = vadd.f32 0.0, %v1687
  %v1689 = vpop.f32.mrb[0].mxu0
  %1690 = vdwg.mxu0
  %v1691 = vadd.f32 %v1108, %v1688
  %v1692 = vxor.u32 %v1691, 2147483648
  %v1693 = vmul.f32 %v1692, 1.442695
  %v1694 = vpow.pop %v1693
  %v1695 = vadd.f32 %v1694, 1.0
  %v1696 = vrcp.pop %v1695
  %v1697 = vmul.f32 1.0, %v1696
  %v1698 = vtanh.pop %v1691
  %v1699 = vmul.f32 %v1697, %v1609
  %1701 = vrot.lane.b32.xlu0 %v1698, 64
  %v1702 = vpop.permute.xlu0 %1701
  %v1704 = vmul.f32 %v1697, %v1702
  %1706 = vrot.lane.b32.xlu0 %v1704, 32
  %v1707 = vpop.permute.xlu0 %1706
  %v1709 = vadd.f32 %v1699, %v1707
  %v1710 = vtanh.pop %v1709
  %1712 = vrot.lane.b32.xlu0 %v1710, 64
  %v1713 = vpop.permute.xlu0 %1712
  %v1715 = vmul.f32 %v1697, %v1713
  %1717 = vrot.lane.b32.xlu0 %v1715, 32
  %v1718 = vpop.permute.xlu0 %1717
  %v1719 = vsel %vm197, %v1718, 0
  %1721 = vmatprep.subr.mxu0 0.0
  %1722 = vmatpush1.msra.mxu0 %v1000
  %1723 = vmatprep.subr.mxu0 0.0
  %1724 = vmatpush1.msra.mxu0 %v1001
  %1725 = vmatprep.subr.mxu0 0.0
  %1726 = vmatpush1.msra.mxu0 %v1002
  %1727 = vmatprep.subr.mxu0 0.0
  %1728 = vmatpush1.msra.mxu0 %v1003
  %1729 = vmatprep.subr.mxu0 0.0
  %1730 = vmatpush1.msra.mxu0 0.0
  %1731 = vmatprep.subr.mxu0 0.0
  %1732 = vmatpush1.msra.mxu0 0.0
  %1733 = vmatprep.subr.mxu0 0.0
  %1734 = vmatpush1.msra.mxu0 0.0
  %1735 = vmatprep.subr.mxu0 0.0
  %1736 = vmatpush1.msra.mxu0 0.0
  %1737 = vmatprep.subr.mxu0 0.0
  %1738 = vmatpush1.msra.mxu0 0.0
  %1739 = vmatprep.subr.mxu0 0.0
  %1740 = vmatpush1.msra.mxu0 0.0
  %1741 = vmatprep.subr.mxu0 0.0
  %1742 = vmatpush1.msra.mxu0 0.0
  %1743 = vmatprep.subr.mxu0 0.0
  %1744 = vmatpush1.msra.mxu0 0.0
  %1745 = vmatprep.subr.mxu0 0.0
  %1746 = vmatpush1.msra.mxu0 0.0
  %1747 = vmatprep.subr.mxu0 0.0
  %1748 = vmatpush1.msra.mxu0 0.0
  %1749 = vmatprep.subr.mxu0 0.0
  %1750 = vmatpush1.msra.mxu0 0.0
  %1751 = vmatprep.subr.mxu0 0.0
  %1752 = vmatpush1.msra.mxu0 0.0
  %1753 = vmatprep.subr.mxu0 0.0
  %1754 = vmatpush1.msra.mxu0 0.0
  %1755 = vmatprep.subr.mxu0 0.0
  %1756 = vmatpush1.msra.mxu0 0.0
  %1757 = vmatprep.subr.mxu0 0.0
  %1758 = vmatpush1.msra.mxu0 0.0
  %1759 = vmatprep.subr.mxu0 0.0
  %1760 = vmatpush1.msra.mxu0 0.0
  %1761 = vmatprep.subr.mxu0 0.0
  %1762 = vmatpush1.msra.mxu0 0.0
  %1763 = vmatprep.subr.mxu0 0.0
  %1764 = vmatpush1.msra.mxu0 0.0
  %1765 = vmatprep.subr.mxu0 0.0
  %1766 = vmatpush1.msra.mxu0 0.0
  %1767 = vmatprep.subr.mxu0 0.0
  %1768 = vmatpush1.msra.mxu0 0.0
  %1769 = vmatprep.subr.mxu0 0.0
  %1770 = vmatpush1.msra.mxu0 0.0
  %1771 = vmatprep.subr.mxu0 0.0
  %1772 = vmatpush1.msra.mxu0 0.0
  %1773 = vmatprep.subr.mxu0 0.0
  %1774 = vmatpush1.msra.mxu0 0.0
  %1775 = vmatprep.subr.mxu0 0.0
  %1776 = vmatpush1.msra.mxu0 0.0
  %1777 = vmatprep.subr.mxu0 0.0
  %1778 = vmatpush1.msra.mxu0 0.0
  %1779 = vmatprep.subr.mxu0 0.0
  %1780 = vmatpush1.msra.mxu0 0.0
  %1781 = vmatprep.subr.mxu0 0.0
  %1782 = vmatpush1.msra.mxu0 0.0
  %1783 = vmatprep.subr.mxu0 0.0
  %1784 = vmatpush1.msra.mxu0 0.0
  %1785 = vmatprep.mubr.f32.mxu0 0.0
  %1786 = vmatmul.mubr.f32.gmra.mrb[0].mxu0 %v1719
  %v1787 = vpop.f32.mrb[0].mxu0
  %v1788 = vadd.f32 0.0, %v1787
  %v1789 = vpop.f32.mrb[0].mxu0
  %1790 = vdwg.mxu0
  %v1791 = vadd.f32 %v1113, %v1788
  %v1792 = vxor.u32 %v1791, 2147483648
  %v1793 = vmul.f32 %v1792, 1.442695
  %v1794 = vpow.pop %v1793
  %v1795 = vadd.f32 %v1794, 1.0
  %v1796 = vrcp.pop %v1795
  %v1797 = vmul.f32 1.0, %v1796
  %v1798 = vtanh.pop %v1791
  %v1799 = vmul.f32 %v1797, %v1709
  %1801 = vrot.lane.b32.xlu0 %v1798, 64
  %v1802 = vpop.permute.xlu0 %1801
  %v1804 = vmul.f32 %v1797, %v1802
  %1806 = vrot.lane.b32.xlu0 %v1804, 32
  %v1807 = vpop.permute.xlu0 %1806
  %v1809 = vadd.f32 %v1799, %v1807
  %v1810 = vtanh.pop %v1809
  %1812 = vrot.lane.b32.xlu0 %v1810, 64
  %v1813 = vpop.permute.xlu0 %1812
  %v1815 = vmul.f32 %v1797, %v1813
  %1817 = vrot.lane.b32.xlu0 %v1815, 32
  %v1818 = vpop.permute.xlu0 %1817
  %v1819 = vsel %vm197, %v1818, 0
  %1821 = vmatprep.subr.mxu0 0.0
  %1822 = vmatpush1.msra.mxu0 %v1000
  %1823 = vmatprep.subr.mxu0 0.0
  %1824 = vmatpush1.msra.mxu0 %v1001
  %1825 = vmatprep.subr.mxu0 0.0
  %1826 = vmatpush1.msra.mxu0 %v1002
  %1827 = vmatprep.subr.mxu0 0.0
  %1828 = vmatpush1.msra.mxu0 %v1003
  %1829 = vmatprep.subr.mxu0 0.0
  %1830 = vmatpush1.msra.mxu0 0.0
  %1831 = vmatprep.subr.mxu0 0.0
  %1832 = vmatpush1.msra.mxu0 0.0
  %1833 = vmatprep.subr.mxu0 0.0
  %1834 = vmatpush1.msra.mxu0 0.0
  %1835 = vmatprep.subr.mxu0 0.0
  %1836 = vmatpush1.msra.mxu0 0.0
  %1837 = vmatprep.subr.mxu0 0.0
  %1838 = vmatpush1.msra.mxu0 0.0
  %1839 = vmatprep.subr.mxu0 0.0
  %1840 = vmatpush1.msra.mxu0 0.0
  %1841 = vmatprep.subr.mxu0 0.0
  %1842 = vmatpush1.msra.mxu0 0.0
  %1843 = vmatprep.subr.mxu0 0.0
  %1844 = vmatpush1.msra.mxu0 0.0
  %1845 = vmatprep.subr.mxu0 0.0
  %1846 = vmatpush1.msra.mxu0 0.0
  %1847 = vmatprep.subr.mxu0 0.0
  %1848 = vmatpush1.msra.mxu0 0.0
  %1849 = vmatprep.subr.mxu0 0.0
  %1850 = vmatpush1.msra.mxu0 0.0
  %1851 = vmatprep.subr.mxu0 0.0
  %1852 = vmatpush1.msra.mxu0 0.0
  %1853 = vmatprep.subr.mxu0 0.0
  %1854 = vmatpush1.msra.mxu0 0.0
  %1855 = vmatprep.subr.mxu0 0.0
  %1856 = vmatpush1.msra.mxu0 0.0
  %1857 = vmatprep.subr.mxu0 0.0
  %1858 = vmatpush1.msra.mxu0 0.0
  %1859 = vmatprep.subr.mxu0 0.0
  %1860 = vmatpush1.msra.mxu0 0.0
  %1861 = vmatprep.subr.mxu0 0.0
  %1862 = vmatpush1.msra.mxu0 0.0
  %1863 = vmatprep.subr.mxu0 0.0
  %1864 = vmatpush1.msra.mxu0 0.0
  %1865 = vmatprep.subr.mxu0 0.0
  %1866 = vmatpush1.msra.mxu0 0.0
  %1867 = vmatprep.subr.mxu0 0.0
  %1868 = vmatpush1.msra.mxu0 0.0
  %1869 = vmatprep.subr.mxu0 0.0
  %1870 = vmatpush1.msra.mxu0 0.0
  %1871 = vmatprep.subr.mxu0 0.0
  %1872 = vmatpush1.msra.mxu0 0.0
  %1873 = vmatprep.subr.mxu0 0.0
  %1874 = vmatpush1.msra.mxu0 0.0
  %1875 = vmatprep.subr.mxu0 0.0
  %1876 = vmatpush1.msra.mxu0 0.0
  %1877 = vmatprep.subr.mxu0 0.0
  %1878 = vmatpush1.msra.mxu0 0.0
  %1879 = vmatprep.subr.mxu0 0.0
  %1880 = vmatpush1.msra.mxu0 0.0
  %1881 = vmatprep.subr.mxu0 0.0
  %1882 = vmatpush1.msra.mxu0 0.0
  %1883 = vmatprep.subr.mxu0 0.0
  %1884 = vmatpush1.msra.mxu0 0.0
  %1885 = vmatprep.mubr.f32.mxu0 0.0
  %1886 = vmatmul.mubr.f32.gmra.mrb[0].mxu0 %v1819
  %v1887 = vpop.f32.mrb[0].mxu0
  %v1888 = vadd.f32 0.0, %v1887
  %v1889 = vpop.f32.mrb[0].mxu0
  %1890 = vdwg.mxu0
  %v1891 = vadd.f32 %v1118, %v1888
  %v1892 = vxor.u32 %v1891, 2147483648
  %v1893 = vmul.f32 %v1892, 1.442695
  %v1894 = vpow.pop %v1893
  %v1895 = vadd.f32 %v1894, 1.0
  %v1896 = vrcp.pop %v1895
  %v1897 = vmul.f32 1.0, %v1896
  %v1898 = vtanh.pop %v1891
  %v1899 = vmul.f32 %v1897, %v1809
  %1901 = vrot.lane.b32.xlu0 %v1898, 64
  %v1902 = vpop.permute.xlu0 %1901
  %v1904 = vmul.f32 %v1897, %v1902
  %1906 = vrot.lane.b32.xlu0 %v1904, 32
  %v1907 = vpop.permute.xlu0 %1906
  %v1909 = vadd.f32 %v1899, %v1907
  %v1910 = vtanh.pop %v1909
  %1912 = vrot.lane.b32.xlu0 %v1910, 64
  %v1913 = vpop.permute.xlu0 %1912
  %v1915 = vmul.f32 %v1897, %v1913
  %v1916 = vld [vmem:[%s7] sm:$0xff]
  %v1917 = vld [vmem:[%s7 + $0x8] sm:$0xff]
  %v1918 = vld [vmem:[%s7 + $0x10] sm:$0xff]
  %v1919 = vld [vmem:[%s7 + $0x18] sm:$0xff]
  %v1920 = vld [vmem:[%s8] sm:$0x1]
  %v1922 = vlaneseq
  %v1923 = vshrl.u32 %v1922, 7
  %v1924 = vsub.s32 0, %v1923
  %v1925 = vrot.slane %v1920, %v1924
  %1928 = vrot.lane.b32.xlu0 %v1915, 32
  %v1929 = vpop.permute.xlu0 %1928
  %v1930 = vsel %vm197, %v1929, 0
  %1932 = vmatprep.subr.mxu0 0.0
  %1933 = vmatpush1.msra.mxu0 %v1916
  %1934 = vmatprep.subr.mxu0 0.0
  %1935 = vmatpush1.msra.mxu0 %v1917
  %1936 = vmatprep.subr.mxu0 0.0
  %1937 = vmatpush1.msra.mxu0 %v1918
  %1938 = vmatprep.subr.mxu0 0.0
  %1939 = vmatpush1.msra.mxu0 %v1919
  %1940 = vmatprep.subr.mxu0 0.0
  %1941 = vmatpush1.msra.mxu0 0.0
  %1942 = vmatprep.subr.mxu0 0.0
  %1943 = vmatpush1.msra.mxu0 0.0
  %1944 = vmatprep.subr.mxu0 0.0
  %1945 = vmatpush1.msra.mxu0 0.0
  %1946 = vmatprep.subr.mxu0 0.0
  %1947 = vmatpush1.msra.mxu0 0.0
  %1948 = vmatprep.subr.mxu0 0.0
  %1949 = vmatpush1.msra.mxu0 0.0
  %1950 = vmatprep.subr.mxu0 0.0
  %1951 = vmatpush1.msra.mxu0 0.0
  %1952 = vmatprep.subr.mxu0 0.0
  %1953 = vmatpush1.msra.mxu0 0.0
  %1954 = vmatprep.subr.mxu0 0.0
  %1955 = vmatpush1.msra.mxu0 0.0
  %1956 = vmatprep.subr.mxu0 0.0
  %1957 = vmatpush1.msra.mxu0 0.0
  %1958 = vmatprep.subr.mxu0 0.0
  %1959 = vmatpush1.msra.mxu0 0.0
  %1960 = vmatprep.subr.mxu0 0.0
  %1961 = vmatpush1.msra.mxu0 0.0
  %1962 = vmatprep.subr.mxu0 0.0
  %1963 = vmatpush1.msra.mxu0 0.0
  %1964 = vmatprep.subr.mxu0 0.0
  %1965 = vmatpush1.msra.mxu0 0.0
  %1966 = vmatprep.subr.mxu0 0.0
  %1967 = vmatpush1.msra.mxu0 0.0
  %1968 = vmatprep.subr.mxu0 0.0
  %1969 = vmatpush1.msra.mxu0 0.0
  %1970 = vmatprep.subr.mxu0 0.0
  %1971 = vmatpush1.msra.mxu0 0.0
  %1972 = vmatprep.subr.mxu0 0.0
  %1973 = vmatpush1.msra.mxu0 0.0
  %1974 = vmatprep.subr.mxu0 0.0
  %1975 = vmatpush1.msra.mxu0 0.0
  %1976 = vmatprep.subr.mxu0 0.0
  %1977 = vmatpush1.msra.mxu0 0.0
  %1978 = vmatprep.subr.mxu0 0.0
  %1979 = vmatpush1.msra.mxu0 0.0
  %1980 = vmatprep.subr.mxu0 0.0
  %1981 = vmatpush1.msra.mxu0 0.0
  %1982 = vmatprep.subr.mxu0 0.0
  %1983 = vmatpush1.msra.mxu0 0.0
  %1984 = vmatprep.subr.mxu0 0.0
  %1985 = vmatpush1.msra.mxu0 0.0
  %1986 = vmatprep.subr.mxu0 0.0
  %1987 = vmatpush1.msra.mxu0 0.0
  %1988 = vmatprep.subr.mxu0 0.0
  %1989 = vmatpush1.msra.mxu0 0.0
  %1990 = vmatprep.subr.mxu0 0.0
  %1991 = vmatpush1.msra.mxu0 0.0
  %1992 = vmatprep.subr.mxu0 0.0
  %1993 = vmatpush1.msra.mxu0 0.0
  %1994 = vmatprep.subr.mxu0 0.0
  %1995 = vmatpush1.msra.mxu0 0.0
  %1996 = vmatprep.mubr.f32.mxu0 0.0
  %1997 = vmatmul.mubr.f32.gmra.mrb[0].mxu0 %v1930
  %v1998 = vpop.f32.mrb[0].mxu0
  %v1999 = vadd.f32 %v1925, %v1998
  %v2000 = vpop.f32.mrb[0].mxu0
  %2001 = vdwg.mxu0
  %v2002 = vmax.f32 %v1999, 0.0
  %v2003 = vld [vmem:[%s9] sm:$0xff]
  %v2004 = vld [vmem:[%s9 + $0x8] sm:$0xff]
  %v2005 = vld [vmem:[%s9 + $0x10] sm:$0xff]
  %v2006 = vld [vmem:[%s9 + $0x18] sm:$0xff]
  %v2007 = vld [vmem:[%s9 + $0x20] sm:$0xff]
  %v2008 = vld [vmem:[%s9 + $0x28] sm:$0xff]
  %v2009 = vld [vmem:[%s9 + $0x30] sm:$0xff]
  %v2010 = vld [vmem:[%s9 + $0x38] sm:$0xff]
  %v2011 = vld [vmem:[%s10] sm:$0x1]
  %v2013 = vlaneseq
  %v2014 = vshrl.u32 %v2013, 7
  %v2015 = vsub.s32 0, %v2014
  %v2016 = vrot.slane %v2011, %v2015
  %vm2018 = vcmask 523264
  %v2020 = vsel %vm2018, %v2002, 0
  %2022 = vmatprep.subr.mxu0 0.0
  %2023 = vmatpush1.msra.mxu0 %v2003
  %2024 = vmatprep.subr.mxu0 0.0
  %2025 = vmatpush1.msra.mxu0 %v2004
  %2026 = vmatprep.subr.mxu0 0.0
  %2027 = vmatpush1.msra.mxu0 %v2005
  %2028 = vmatprep.subr.mxu0 0.0
  %2029 = vmatpush1.msra.mxu0 %v2006
  %2030 = vmatprep.subr.mxu0 0.0
  %2031 = vmatpush1.msra.mxu0 %v2007
  %2032 = vmatprep.subr.mxu0 0.0
  %2033 = vmatpush1.msra.mxu0 %v2008
  %2034 = vmatprep.subr.mxu0 0.0
  %2035 = vmatpush1.msra.mxu0 %v2009
  %2036 = vmatprep.subr.mxu0 0.0
  %2037 = vmatpush1.msra.mxu0 %v2010
  %2038 = vmatprep.subr.mxu0 0.0
  %2039 = vmatpush1.msra.mxu0 0.0
  %2040 = vmatprep.subr.mxu0 0.0
  %2041 = vmatpush1.msra.mxu0 0.0
  %2042 = vmatprep.subr.mxu0 0.0
  %2043 = vmatpush1.msra.mxu0 0.0
  %2044 = vmatprep.subr.mxu0 0.0
  %2045 = vmatpush1.msra.mxu0 0.0
  %2046 = vmatprep.subr.mxu0 0.0
  %2047 = vmatpush1.msra.mxu0 0.0
  %2048 = vmatprep.subr.mxu0 0.0
  %2049 = vmatpush1.msra.mxu0 0.0
  %2050 = vmatprep.subr.mxu0 0.0
  %2051 = vmatpush1.msra.mxu0 0.0
  %2052 = vmatprep.subr.mxu0 0.0
  %2053 = vmatpush1.msra.mxu0 0.0
  %2054 = vmatprep.subr.mxu0 0.0
  %2055 = vmatpush1.msra.mxu0 0.0
  %2056 = vmatprep.subr.mxu0 0.0
  %2057 = vmatpush1.msra.mxu0 0.0
  %2058 = vmatprep.subr.mxu0 0.0
  %2059 = vmatpush1.msra.mxu0 0.0
  %2060 = vmatprep.subr.mxu0 0.0
  %2061 = vmatpush1.msra.mxu0 0.0
  %2062 = vmatprep.subr.mxu0 0.0
  %2063 = vmatpush1.msra.mxu0 0.0
  %2064 = vmatprep.subr.mxu0 0.0
  %2065 = vmatpush1.msra.mxu0 0.0
  %2066 = vmatprep.subr.mxu0 0.0
  %2067 = vmatpush1.msra.mxu0 0.0
  %2068 = vmatprep.subr.mxu0 0.0
  %2069 = vmatpush1.msra.mxu0 0.0
  %2070 = vmatprep.subr.mxu0 0.0
  %2071 = vmatpush1.msra.mxu0 0.0
  %2072 = vmatprep.subr.mxu0 0.0
  %2073 = vmatpush1.msra.mxu0 0.0
  %2074 = vmatprep.subr.mxu0 0.0
  %2075 = vmatpush1.msra.mxu0 0.0
  %2076 = vmatprep.subr.mxu0 0.0
  %2077 = vmatpush1.msra.mxu0 0.0
  %2078 = vmatprep.subr.mxu0 0.0
  %2079 = vmatpush1.msra.mxu0 0.0
  %2080 = vmatprep.subr.mxu0 0.0
  %2081 = vmatpush1.msra.mxu0 0.0
  %2082 = vmatprep.subr.mxu0 0.0
  %2083 = vmatpush1.msra.mxu0 0.0
  %2084 = vmatprep.subr.mxu0 0.0
  %2085 = vmatpush1.msra.mxu0 0.0
  %2086 = vmatprep.mubr.f32.mxu0 0.0
  %2087 = vmatmul.mubr.f32.gmra.mrb[0].mxu0 %v2020
  %v2088 = vpop.f32.mrb[0].mxu0
  %v2089 = vadd.f32 %v2016, %v2088
  %v2090 = vpop.f32.mrb[0].mxu0
  %2091 = vdwg.mxu0
  %v2092 = vmax.f32 %v2089, 0.0
  %v2093 = vld [vmem:[%s11] sm:$0xff]
  %v2094 = vld [vmem:[%s11 + $0x8] sm:$0xff]
  %v2095 = vld [vmem:[%s11 + $0x10] sm:$0xff]
  %v2096 = vld [vmem:[%s11 + $0x18] sm:$0xff]
  %v2097 = vld [vmem:[#allocation2] sm:$0x1]
  %v2099 = vlaneseq
  %v2100 = vshrl.u32 %v2099, 7
  %v2101 = vsub.s32 0, %v2100
  %v2102 = vrot.slane %v2097, %v2101
  %v2105 = vsel %vm197, %v2092, 0
  %2107 = vmatprep.subr.mxu0 0.0
  %2108 = vmatpush1.msra.mxu0 %v2093
  %2109 = vmatprep.subr.mxu0 0.0
  %2110 = vmatpush1.msra.mxu0 %v2094
  %2111 = vmatprep.subr.mxu0 0.0
  %2112 = vmatpush1.msra.mxu0 %v2095
  %2113 = vmatprep.subr.mxu0 0.0
  %2114 = vmatpush1.msra.mxu0 %v2096
  %2115 = vmatprep.subr.mxu0 0.0
  %2116 = vmatpush1.msra.mxu0 0.0
  %2117 = vmatprep.subr.mxu0 0.0
  %2118 = vmatpush1.msra.mxu0 0.0
  %2119 = vmatprep.subr.mxu0 0.0
  %2120 = vmatpush1.msra.mxu0 0.0
  %2121 = vmatprep.subr.mxu0 0.0
  %2122 = vmatpush1.msra.mxu0 0.0
  %2123 = vmatprep.subr.mxu0 0.0
  %2124 = vmatpush1.msra.mxu0 0.0
  %2125 = vmatprep.subr.mxu0 0.0
  %2126 = vmatpush1.msra.mxu0 0.0
  %2127 = vmatprep.subr.mxu0 0.0
  %2128 = vmatpush1.msra.mxu0 0.0
  %2129 = vmatprep.subr.mxu0 0.0
  %2130 = vmatpush1.msra.mxu0 0.0
  %2131 = vmatprep.subr.mxu0 0.0
  %2132 = vmatpush1.msra.mxu0 0.0
  %2133 = vmatprep.subr.mxu0 0.0
  %2134 = vmatpush1.msra.mxu0 0.0
  %2135 = vmatprep.subr.mxu0 0.0
  %2136 = vmatpush1.msra.mxu0 0.0
  %2137 = vmatprep.subr.mxu0 0.0
  %2138 = vmatpush1.msra.mxu0 0.0
  %2139 = vmatprep.subr.mxu0 0.0
  %2140 = vmatpush1.msra.mxu0 0.0
  %2141 = vmatprep.subr.mxu0 0.0
  %2142 = vmatpush1.msra.mxu0 0.0
  %2143 = vmatprep.subr.mxu0 0.0
  %2144 = vmatpush1.msra.mxu0 0.0
  %2145 = vmatprep.subr.mxu0 0.0
  %2146 = vmatpush1.msra.mxu0 0.0
  %2147 = vmatprep.subr.mxu0 0.0
  %2148 = vmatpush1.msra.mxu0 0.0
  %2149 = vmatprep.subr.mxu0 0.0
  %2150 = vmatpush1.msra.mxu0 0.0
  %2151 = vmatprep.subr.mxu0 0.0
  %2152 = vmatpush1.msra.mxu0 0.0
  %2153 = vmatprep.subr.mxu0 0.0
  %2154 = vmatpush1.msra.mxu0 0.0
  %2155 = vmatprep.subr.mxu0 0.0
  %2156 = vmatpush1.msra.mxu0 0.0
  %2157 = vmatprep.subr.mxu0 0.0
  %2158 = vmatpush1.msra.mxu0 0.0
  %2159 = vmatprep.subr.mxu0 0.0
  %2160 = vmatpush1.msra.mxu0 0.0
  %2161 = vmatprep.subr.mxu0 0.0
  %2162 = vmatpush1.msra.mxu0 0.0
  %2163 = vmatprep.subr.mxu0 0.0
  %2164 = vmatpush1.msra.mxu0 0.0
  %2165 = vmatprep.subr.mxu0 0.0
  %2166 = vmatpush1.msra.mxu0 0.0
  %2167 = vmatprep.subr.mxu0 0.0
  %2168 = vmatpush1.msra.mxu0 0.0
  %2169 = vmatprep.subr.mxu0 0.0
  %2170 = vmatpush1.msra.mxu0 0.0
  %2171 = vmatprep.mubr.f32.mxu0 0.0
  %2172 = vmatmul.mubr.f32.gmra.mrb[0].mxu0 %v2105
  %v2173 = vpop.f32.mrb[0].mxu0
  %v2174 = vadd.f32 %v2102, %v2173
  %v2175 = vpop.f32.mrb[0].mxu0
  %2176 = vdwg.mxu0
  %vm2177 = vcmask 7168
  %2178 = vst.msk [vmem:[%s13] sm:$0xff] %vm2177, %v2174
  // Predicated region
  $region54: #{_forward_impl.1} parent=0 // pred_check
    _
  $region55: #{_forward_impl.1} parent=0 // pred_check_branch
    %2180 = sbr.rel (0) target = $region57
  $region56: #{_forward_impl.1} parent=0 // pred_region
    _
  $region57: #{_forward_impl.1} parent=0 // pred_fallthru
    _
  // Predicated region
  $region58: #{_forward_impl.1} parent=0 // pred_check
    _
  $region59: #{_forward_impl.1} parent=0 // pred_check_branch
    %2182 = sbr.rel (0) target = $region61
  $region60: #{_forward_impl.1} parent=0 // pred_region
    _
  $region61: #{_forward_impl.1} parent=0 // pred_fallthru
    _

</llo_original>
